<compile_context>
chip_gen: v6e
topology: v6e:2x2x1
jax: 0.10.0
libtpu: 0.0.40
codegen_flags: <defaults>
</compile_context>

<pallas_src>
import math

import jax
import jax.numpy as jnp
from jax.experimental import pallas as pl
from jax.experimental.pallas import tpu as pltpu

# ----------------------------- config (small, BERT-like) ---------------------
VOCAB_SIZE = 128
TYPE_VOCAB_SIZE = 2
MAX_POS = 64
HIDDEN = 32
NUM_HEADS = 4
HEAD_DIM = HIDDEN // NUM_HEADS
INTERMEDIATE = 64
NUM_LAYERS = 2
LN_EPS = 1e-12  # BERT default


# ----------------------------- in-kernel helpers ------------------------------
def _gelu(x):
    # TODO(synk): HF BertModel's default 'gelu' is the exact erf form; this tanh
    # approximation differs by <1e-3 and keeps the kernel on plain VPU/EUP ops.
    c = math.sqrt(2.0 / math.pi)
    return 0.5 * x * (1.0 + jnp.tanh(c * (x + 0.044715 * x * x * x)))


def _layernorm(x, g, b):
    mu = jnp.mean(x, axis=-1, keepdims=True)
    var = jnp.mean(jnp.square(x - mu), axis=-1, keepdims=True)
    return (x - mu) * jax.lax.rsqrt(var + LN_EPS) * g + b


# ----------------------------- fused encoder kernel ---------------------------
def _bert_encoder_kernel(
    we_ref, te_ref, pe_ref, bias_ref, eg_ref, eb_ref,         # embeddings / mask
    wqkv_ref, bqkv_ref, wo_ref, bo_ref, ln1g_ref, ln1b_ref,   # attention block
    w1_ref, b1_ref, w2_ref, b2_ref, ln2g_ref, ln2b_ref,       # FFN block
    o_ref,                                                    # [S, H] output slab
    h_scr,                                                    # VMEM carried hidden [S, H]
):
    l = pl.program_id(1)  # layer index (innermost grid axis)

    # grid step l == 0: fused (word + pos + type) embedding add + LayerNorm
    @pl.when(l == 0)
    def _():
        emb = we_ref[...] + te_ref[...] + pe_ref[...]
        h_scr[...] = _layernorm(emb, eg_ref[...], eb_ref[...])

    h = h_scr[...]                      # [S, H]
    bias = bias_ref[0]                  # [1, S] additive key mask (broadcasts over queries)

    # ---- fused QKV projection: one [S,H] @ [H,3H] matmul ----
    qkv = jnp.dot(h, wqkv_ref[0], preferred_element_type=jnp.float32) + bqkv_ref[0]

    # ---- all heads in one body; merge-heads + output projection fused as
    #      attn = sum_h ctx_h @ wo[h*Dh:(h+1)*Dh, :]  (== concat(ctx) @ wo) ----
    scale = 1.0 / math.sqrt(HEAD_DIM)
    wo = wo_ref[0]                      # [H, H]
    attn = jnp.zeros_like(h)
    for hh in range(NUM_HEADS):
        lo, hi = hh * HEAD_DIM, (hh + 1) * HEAD_DIM
        q = qkv[:, lo:hi]                                   # [S, Dh]
        k = qkv[:, HIDDEN + lo:HIDDEN + hi]                 # [S, Dh]
        v = qkv[:, 2 * HIDDEN + lo:2 * HIDDEN + hi]         # [S, Dh]
        s = jnp.dot(q, k.T, preferred_element_type=jnp.float32) * scale + bias
        m = jnp.max(s, axis=-1, keepdims=True)
        p = jnp.exp(s - m)
        p = p * pl.reciprocal(jnp.sum(p, axis=-1, keepdims=True), approx=True)
        ctx = jnp.dot(p, v, preferred_element_type=jnp.float32)           # [S, Dh]
        attn = attn + jnp.dot(ctx, wo[lo:hi, :], preferred_element_type=jnp.float32)
    attn = attn + bo_ref[0]

    # ---- residual + LayerNorm ----
    h1 = _layernorm(attn + h, ln1g_ref[0], ln1b_ref[0])

    # ---- FFN: w1 + GELU + w2, residual + LayerNorm ----
    ff = _gelu(jnp.dot(h1, w1_ref[0], preferred_element_type=jnp.float32) + b1_ref[0])
    ff = jnp.dot(ff, w2_ref[0], preferred_element_type=jnp.float32) + b2_ref[0]
    h2 = _layernorm(ff + h1, ln2g_ref[0], ln2b_ref[0])

    h_scr[...] = h2     # carry to next layer (stays in VMEM)
    o_ref[...] = h2     # written back to HBM only when the batch block changes


# ----------------------------- forward wrapper --------------------------------
def bert_forward(params, x, segs, mask):
    """Mirrors `top_vec, _ = BertModel(x, segs, attention_mask=mask); return top_vec`."""
    B, S = x.shape
    L = params["wqkv"].shape[0]

    # embedding gathers (glue); the add + LayerNorm happen inside the kernel
    we = params["word_emb"][x].reshape(B * S, HIDDEN)
    te = params["type_emb"][segs].reshape(B * S, HIDDEN)
    pe = params["pos_emb"][:S]                                           # [S, H]
    bias = ((1.0 - mask.astype(jnp.float32)) * -10000.0).reshape(B, 1, S)

    lyr3 = lambda b, l: (l, 0, 0)      # per-layer stacked params
    per_batch = lambda b, l: (b, 0)    # per-batch row slabs
    shared2 = lambda b, l: (0, 0)      # shared 2-D params

    in_specs = [
        pl.BlockSpec((S, HIDDEN), per_batch),                 # we
        pl.BlockSpec((S, HIDDEN), per_batch),                 # te
        pl.BlockSpec((S, HIDDEN), shared2),                   # pe
        pl.BlockSpec((1, 1, S), lambda b, l: (b, 0, 0)),      # bias
        pl.BlockSpec((1, HIDDEN), shared2),                   # emb_ln_g
        pl.BlockSpec((1, HIDDEN), shared2),                   # emb_ln_b
        pl.BlockSpec((1, HIDDEN, 3 * HIDDEN), lyr3),          # wqkv
        pl.BlockSpec((1, 1, 3 * HIDDEN), lyr3),               # bqkv
        pl.BlockSpec((1, HIDDEN, HIDDEN), lyr3),              # wo
        pl.BlockSpec((1, 1, HIDDEN), lyr3),                   # bo
        pl.BlockSpec((1, 1, HIDDEN), lyr3),                   # ln1_g
        pl.BlockSpec((1, 1, HIDDEN), lyr3),                   # ln1_b
        pl.BlockSpec((1, HIDDEN, INTERMEDIATE), lyr3),        # w1
        pl.BlockSpec((1, 1, INTERMEDIATE), lyr3),             # b1
        pl.BlockSpec((1, INTERMEDIATE, HIDDEN), lyr3),        # w2
        pl.BlockSpec((1, 1, HIDDEN), lyr3),                   # b2
        pl.BlockSpec((1, 1, HIDDEN), lyr3),                   # ln2_g
        pl.BlockSpec((1, 1, HIDDEN), lyr3),                   # ln2_b
    ]

    out = pl.pallas_call(
        _bert_encoder_kernel,
        grid=(B, L),
        in_specs=in_specs,
        out_specs=pl.BlockSpec((S, HIDDEN), per_batch),
        out_shape=jax.ShapeDtypeStruct((B * S, HIDDEN), jnp.float32),
        scratch_shapes=[pltpu.VMEM((S, HIDDEN), jnp.float32)],
        compiler_params=pltpu.CompilerParams(
            dimension_semantics=("parallel", "arbitrary")),
    )(we, te, pe, bias,
      params["emb_ln_g"], params["emb_ln_b"],
      params["wqkv"], params["bqkv"], params["wo"], params["bo"],
      params["ln1_g"], params["ln1_b"],
      params["w1"], params["b1"], params["w2"], params["b2"],
      params["ln2_g"], params["ln2_b"])

    # TODO(synk): pooler output (the `_` in `top_vec, _`) is discarded by the module, so not computed.
    return out.reshape(B, S, HIDDEN)  # top_vec


# ----------------------------- pure-JAX reference ------------------------------
def bert_forward_ref(params, x, segs, mask):
    B, S = x.shape

    def ln(v, g, b):
        mu = v.mean(-1, keepdims=True)
        var = ((v - mu) ** 2).mean(-1, keepdims=True)
        return (v - mu) * jax.lax.rsqrt(var + LN_EPS) * g.reshape(-1) + b.reshape(-1)

    h = params["word_emb"][x] + params["type_emb"][segs] + params["pos_emb"][:S][None]
    h = ln(h, params["emb_ln_g"], params["emb_ln_b"])                 # [B, S, H]
    bias = ((1.0 - mask.astype(jnp.float32)) * -10000.0)[:, None, None, :]

    for l in range(NUM_LAYERS):
        qkv = h @ params["wqkv"][l] + params["bqkv"][l]
        q, k, v = jnp.split(qkv, 3, axis=-1)
        heads = lambda t: t.reshape(B, S, NUM_HEADS, HEAD_DIM).transpose(0, 2, 1, 3)
        q, k, v = heads(q), heads(k), heads(v)
        s = jnp.einsum("bhqd,bhkd->bhqk", q, k) / math.sqrt(HEAD_DIM) + bias
        p = jax.nn.softmax(s, axis=-1)
        ctx = jnp.einsum("bhqk,bhkd->bhqd", p, v).transpose(0, 2, 1, 3).reshape(B, S, HIDDEN)
        attn = ctx @ params["wo"][l] + params["bo"][l]
        h = ln(attn + h, params["ln1_g"][l], params["ln1_b"][l])
        ff = _gelu(h @ params["w1"][l] + params["b1"][l]) @ params["w2"][l] + params["b2"][l]
        h = ln(ff + h, params["ln2_g"][l], params["ln2_b"][l])
    return h


# ----------------------------- parameter init --------------------------------
def init_params(key):
    def nrm(k, shape, std=0.02):
        return std * jax.random.normal(k, shape, dtype=jnp.float32)

    ks = iter(jax.random.split(key, 16))
    L = NUM_LAYERS
    return {
        "word_emb": nrm(next(ks), (VOCAB_SIZE, HIDDEN)),
        "pos_emb": nrm(next(ks), (MAX_POS, HIDDEN)),
        "type_emb": nrm(next(ks), (TYPE_VOCAB_SIZE, HIDDEN)),
        "emb_ln_g": jnp.ones((1, HIDDEN), jnp.float32),
        "emb_ln_b": jnp.zeros((1, HIDDEN), jnp.float32),
        # per-layer params stacked along a leading layer axis; QKV fused to [H, 3H]
        "wqkv": nrm(next(ks), (L, HIDDEN, 3 * HIDDEN)),
        "bqkv": jnp.zeros((L, 1, 3 * HIDDEN), jnp.float32),
        "wo": nrm(next(ks), (L, HIDDEN, HIDDEN)),
        "bo": jnp.zeros((L, 1, HIDDEN), jnp.float32),
        "ln1_g": jnp.ones((L, 1, HIDDEN), jnp.float32),
        "ln1_b": jnp.zeros((L, 1, HIDDEN), jnp.float32),
        "w1": nrm(next(ks), (L, HIDDEN, INTERMEDIATE)),
        "b1": jnp.zeros((L, 1, INTERMEDIATE), jnp.float32),
        "w2": nrm(next(ks), (L, INTERMEDIATE, HIDDEN)),
        "b2": jnp.zeros((L, 1, HIDDEN), jnp.float32),
        "ln2_g": jnp.ones((L, 1, HIDDEN), jnp.float32),
        "ln2_b": jnp.zeros((L, 1, HIDDEN), jnp.float32),
    }


# ----------------------------- main -------------------------------------------
if __name__ == "__main__":
    B, S = 2, 8
    key = jax.random.PRNGKey(0)
    k_par, k_x, k_seg = jax.random.split(key, 3)

    params = init_params(k_par)
    x = jax.random.randint(k_x, (B, S), 0, VOCAB_SIZE, dtype=jnp.int32)
    segs = jax.random.randint(k_seg, (B, S), 0, TYPE_VOCAB_SIZE, dtype=jnp.int32)
    # mask: 1 = attend, 0 = pad (last two tokens of example 1 are padding)
    mask = jnp.ones((B, S), dtype=jnp.float32).at[1, -2:].set(0.0)

    top_vec = jax.jit(bert_forward)(params, x, segs, mask)
    top_vec = jax.block_until_ready(top_vec)
    assert top_vec.shape == (B, S, HIDDEN)
    assert bool(jnp.all(jnp.isfinite(top_vec)))

    ref = bert_forward_ref(params, x, segs, mask)
    assert bool(jnp.allclose(top_vec, ref, atol=2e-2, rtol=2e-2)), \
        float(jnp.max(jnp.abs(top_vec - ref)))

    print("KERNEL_OK")
</pallas_src>

<mosaic_0001>
module attributes {stable_mosaic.version = 11 : i64} {
  func.func @_bert_encoder_kernel(%arg0: i32, %arg1: i32, %arg2: memref<8x32xf32, #tpu.memory_space<vmem>>, %arg3: memref<8x32xf32, #tpu.memory_space<vmem>>, %arg4: memref<8x32xf32, #tpu.memory_space<vmem>>, %arg5: memref<1x1x8xf32, #tpu.memory_space<vmem>>, %arg6: memref<1x32xf32, #tpu.memory_space<vmem>>, %arg7: memref<1x32xf32, #tpu.memory_space<vmem>>, %arg8: memref<1x32x96xf32, #tpu.memory_space<vmem>>, %arg9: memref<1x1x96xf32, #tpu.memory_space<vmem>>, %arg10: memref<1x32x32xf32, #tpu.memory_space<vmem>>, %arg11: memref<1x1x32xf32, #tpu.memory_space<vmem>>, %arg12: memref<1x1x32xf32, #tpu.memory_space<vmem>>, %arg13: memref<1x1x32xf32, #tpu.memory_space<vmem>>, %arg14: memref<1x32x64xf32, #tpu.memory_space<vmem>>, %arg15: memref<1x1x64xf32, #tpu.memory_space<vmem>>, %arg16: memref<1x64x32xf32, #tpu.memory_space<vmem>>, %arg17: memref<1x1x32xf32, #tpu.memory_space<vmem>>, %arg18: memref<1x1x32xf32, #tpu.memory_space<vmem>>, %arg19: memref<1x1x32xf32, #tpu.memory_space<vmem>>, %arg20: memref<8x32xf32, #tpu.memory_space<vmem>>, %arg21: memref<8x32xf32, #tpu.memory_space<vmem>>) attributes {dimension_semantics = [#tpu.dimension_semantics<parallel>, #tpu.dimension_semantics<arbitrary>], iteration_bounds = array<i64: 2, 2>, scalar_prefetch = 0 : i64, scratch_operands = 1 : i64, tpu.core_type = #tpu.core_type<tc>, window_params = [{transform_indices = @transform_0, window_bounds = array<i64: 8, 32>}, {transform_indices = @transform_1, window_bounds = array<i64: 8, 32>}, {pipeline_mode = #tpu.pipeline_mode<synchronous>, transform_indices = @transform_2, window_bounds = array<i64: 8, 32>}, {transform_indices = @transform_3, window_bounds = array<i64: 1, 1, 8>}, {pipeline_mode = #tpu.pipeline_mode<synchronous>, transform_indices = @transform_4, window_bounds = array<i64: 1, 32>}, {pipeline_mode = #tpu.pipeline_mode<synchronous>, transform_indices = @transform_5, window_bounds = array<i64: 1, 32>}, {transform_indices = @transform_6, window_bounds = array<i64: 1, 32, 96>}, {transform_indices = @transform_7, window_bounds = array<i64: 1, 1, 96>}, {transform_indices = @transform_8, window_bounds = array<i64: 1, 32, 32>}, {transform_indices = @transform_9, window_bounds = array<i64: 1, 1, 32>}, {transform_indices = @transform_10, window_bounds = array<i64: 1, 1, 32>}, {transform_indices = @transform_11, window_bounds = array<i64: 1, 1, 32>}, {transform_indices = @transform_12, window_bounds = array<i64: 1, 32, 64>}, {transform_indices = @transform_13, window_bounds = array<i64: 1, 1, 64>}, {transform_indices = @transform_14, window_bounds = array<i64: 1, 64, 32>}, {transform_indices = @transform_15, window_bounds = array<i64: 1, 1, 32>}, {transform_indices = @transform_16, window_bounds = array<i64: 1, 1, 32>}, {transform_indices = @transform_17, window_bounds = array<i64: 1, 1, 32>}, {transform_indices = @transform_18, window_bounds = array<i64: 8, 32>}]} {
    %c0_i32 = arith.constant 0 : i32
    %0 = arith.cmpi eq, %arg1, %c0_i32 : i32
    %1 = arith.extui %0 : i1 to i32
    %c0_i32_0 = arith.constant 0 : i32
    %2 = arith.cmpi ne, %1, %c0_i32_0 : i32
    scf.if %2 {
      %c0_86 = arith.constant 0 : index
      %c0_87 = arith.constant 0 : index
      %195 = vector.load %arg2[%c0_86, %c0_87] : memref<8x32xf32, #tpu.memory_space<vmem>>, vector<8x32xf32>
      %c0_88 = arith.constant 0 : index
      %c0_89 = arith.constant 0 : index
      %196 = vector.load %arg3[%c0_88, %c0_89] : memref<8x32xf32, #tpu.memory_space<vmem>>, vector<8x32xf32>
      %197 = arith.addf %195, %196 : vector<8x32xf32>
      %c0_90 = arith.constant 0 : index
      %c0_91 = arith.constant 0 : index
      %198 = vector.load %arg4[%c0_90, %c0_91] : memref<8x32xf32, #tpu.memory_space<vmem>>, vector<8x32xf32>
      %199 = arith.addf %197, %198 : vector<8x32xf32>
      %c0_92 = arith.constant 0 : index
      %c0_93 = arith.constant 0 : index
      %200 = vector.load %arg6[%c0_92, %c0_93] : memref<1x32xf32, #tpu.memory_space<vmem>>, vector<1x32xf32>
      %c0_94 = arith.constant 0 : index
      %c0_95 = arith.constant 0 : index
      %201 = vector.load %arg7[%c0_94, %c0_95] : memref<1x32xf32, #tpu.memory_space<vmem>>, vector<1x32xf32>
      %cst_96 = arith.constant dense<0.000000e+00> : vector<8xf32>
      %202 = vector.multi_reduction <add>, %199, %cst_96 [1] : vector<8x32xf32> to vector<8xf32>
      %203 = vector.shape_cast %202 : vector<8xf32> to vector<8x1xf32>
      %cst_97 = arith.constant 3.200000e+01 : f32
      %204 = vector.broadcast %cst_97 : f32 to vector<8x1xf32>
      %205 = arith.divf %203, %204 : vector<8x1xf32>
      %206 = vector.broadcast %205 : vector<8x1xf32> to vector<8x32xf32>
      %207 = arith.subf %199, %206 : vector<8x32xf32>
      %208 = arith.mulf %207, %207 : vector<8x32xf32>
      %cst_98 = arith.constant dense<0.000000e+00> : vector<8xf32>
      %209 = vector.multi_reduction <add>, %208, %cst_98 [1] : vector<8x32xf32> to vector<8xf32>
      %210 = vector.shape_cast %209 : vector<8xf32> to vector<8x1xf32>
      %cst_99 = arith.constant 3.200000e+01 : f32
      %211 = vector.broadcast %cst_99 : f32 to vector<8x1xf32>
      %212 = arith.divf %210, %211 : vector<8x1xf32>
      %213 = vector.broadcast %205 : vector<8x1xf32> to vector<8x32xf32>
      %214 = arith.subf %199, %213 : vector<8x32xf32>
      %cst_100 = arith.constant 9.99999996E-13 : f32
      %215 = vector.broadcast %cst_100 : f32 to vector<8x1xf32>
      %216 = arith.addf %212, %215 : vector<8x1xf32>
      %217 = math.rsqrt %216 : vector<8x1xf32>
      %218 = vector.broadcast %217 : vector<8x1xf32> to vector<8x32xf32>
      %219 = arith.mulf %214, %218 : vector<8x32xf32>
      %220 = vector.broadcast %200 : vector<1x32xf32> to vector<8x32xf32>
      %221 = arith.mulf %219, %220 : vector<8x32xf32>
      %222 = vector.broadcast %201 : vector<1x32xf32> to vector<8x32xf32>
      %223 = arith.addf %221, %222 : vector<8x32xf32>
      %c0_101 = arith.constant 0 : index
      %c0_102 = arith.constant 0 : index
      %224 = vector.load %arg21[%c0_101, %c0_102] : memref<8x32xf32, #tpu.memory_space<vmem>>, vector<8x32xf32>
      tpu.vector_store %arg21[%c0_101, %c0_102], %223 {strides = array<i32>} : memref<8x32xf32, #tpu.memory_space<vmem>>, vector<8x32xf32>,
    } else {
    }
    %c0 = arith.constant 0 : index
    %c0_1 = arith.constant 0 : index
    %3 = vector.load %arg21[%c0, %c0_1] : memref<8x32xf32, #tpu.memory_space<vmem>>, vector<8x32xf32>
    %c0_2 = arith.constant 0 : index
    %c0_3 = arith.constant 0 : index
    %c0_4 = arith.constant 0 : index
    %4 = vector.load %arg5[%c0_2, %c0_3, %c0_4] : memref<1x1x8xf32, #tpu.memory_space<vmem>>, vector<1x1x8xf32>
    %5 = vector.shape_cast %4 : vector<1x1x8xf32> to vector<1x8xf32>
    %c0_5 = arith.constant 0 : index
    %c0_6 = arith.constant 0 : index
    %c0_7 = arith.constant 0 : index
    %6 = vector.load %arg8[%c0_5, %c0_6, %c0_7] : memref<1x32x96xf32, #tpu.memory_space<vmem>>, vector<1x32x96xf32>
    %7 = vector.shape_cast %6 : vector<1x32x96xf32> to vector<32x96xf32>
    %cst = arith.constant dense<0.000000e+00> : vector<8x96xf32>
    %8 = tpu.matmul %3, %7, %cst {dimension_numbers = #tpu.dot_dimension_numbers<[1], [0], [0], [1], [0, 0, 1, 1], [], []>} : vector<8x32xf32>, vector<32x96xf32>, vector<8x96xf32> -> vector<8x96xf32>
    %c0_8 = arith.constant 0 : index
    %c0_9 = arith.constant 0 : index
    %c0_10 = arith.constant 0 : index
    %9 = vector.load %arg9[%c0_8, %c0_9, %c0_10] : memref<1x1x96xf32, #tpu.memory_space<vmem>>, vector<1x1x96xf32>
    %10 = vector.shape_cast %9 : vector<1x1x96xf32> to vector<1x96xf32>
    %11 = vector.broadcast %10 : vector<1x96xf32> to vector<8x96xf32>
    %12 = arith.addf %8, %11 : vector<8x96xf32>
    %c0_11 = arith.constant 0 : index
    %c0_12 = arith.constant 0 : index
    %c0_13 = arith.constant 0 : index
    %13 = vector.load %arg10[%c0_11, %c0_12, %c0_13] : memref<1x32x32xf32, #tpu.memory_space<vmem>>, vector<1x32x32xf32>
    %14 = vector.shape_cast %13 : vector<1x32x32xf32> to vector<32x32xf32>
    %cst_14 = arith.constant 0.000000e+00 : f32
    %15 = vector.broadcast %cst_14 : f32 to vector<8x32xf32>
    %16 = vector.extract_strided_slice %12 {offsets = [0, 0], sizes = [8, 8], strides = [1, 1]} : vector<8x96xf32> to vector<8x8xf32>
    %17 = vector.extract_strided_slice %12 {offsets = [0, 32], sizes = [8, 8], strides = [1, 1]} : vector<8x96xf32> to vector<8x8xf32>
    %18 = vector.extract_strided_slice %12 {offsets = [0, 64], sizes = [8, 8], strides = [1, 1]} : vector<8x96xf32> to vector<8x8xf32>
    %19 = tpu.transpose %17, [1, 0] : vector<8x8xf32> -> vector<8x8xf32>
    %cst_15 = arith.constant dense<0.000000e+00> : vector<8x8xf32>
    %20 = tpu.matmul %16, %19, %cst_15 {dimension_numbers = #tpu.dot_dimension_numbers<[1], [0], [0], [1], [0, 0, 1, 1], [], []>} : vector<8x8xf32>, vector<8x8xf32>, vector<8x8xf32> -> vector<8x8xf32>
    %cst_16 = arith.constant 0.353553385 : f32
    %21 = vector.broadcast %cst_16 : f32 to vector<8x8xf32>
    %22 = arith.mulf %20, %21 : vector<8x8xf32>
    %23 = vector.broadcast %5 : vector<1x8xf32> to vector<8x8xf32>
    %24 = arith.addf %22, %23 : vector<8x8xf32>
    %cst_17 = arith.constant dense<0xFF800000> : vector<8xf32>
    %25 = vector.multi_reduction <maximumf>, %24, %cst_17 [1] : vector<8x8xf32> to vector<8xf32>
    %26 = vector.shape_cast %25 : vector<8xf32> to vector<8x1xf32>
    %27 = vector.broadcast %26 : vector<8x1xf32> to vector<8x8xf32>
    %28 = arith.subf %24, %27 : vector<8x8xf32>
    %29 = math.exp %28 : vector<8x8xf32>
    %cst_18 = arith.constant dense<0.000000e+00> : vector<8xf32>
    %30 = vector.multi_reduction <add>, %29, %cst_18 [1] : vector<8x8xf32> to vector<8xf32>
    %31 = vector.shape_cast %30 : vector<8xf32> to vector<8x1xf32>
    %32 = tpu.reciprocal %31 {approx = true} : vector<8x1xf32> -> vector<8x1xf32>
    %33 = vector.broadcast %32 : vector<8x1xf32> to vector<8x8xf32>
    %34 = arith.mulf %29, %33 : vector<8x8xf32>
    %cst_19 = arith.constant dense<0.000000e+00> : vector<8x8xf32>
    %35 = tpu.matmul %34, %18, %cst_19 {dimension_numbers = #tpu.dot_dimension_numbers<[1], [0], [0], [1], [0, 0, 1, 1], [], []>} : vector<8x8xf32>, vector<8x8xf32>, vector<8x8xf32> -> vector<8x8xf32>
    %36 = vector.extract_strided_slice %14 {offsets = [0, 0], sizes = [8, 32], strides = [1, 1]} : vector<32x32xf32> to vector<8x32xf32>
    %cst_20 = arith.constant dense<0.000000e+00> : vector<8x32xf32>
    %37 = tpu.matmul %35, %36, %cst_20 {dimension_numbers = #tpu.dot_dimension_numbers<[1], [0], [0], [1], [0, 0, 1, 1], [], []>} : vector<8x8xf32>, vector<8x32xf32>, vector<8x32xf32> -> vector<8x32xf32>
    %38 = arith.addf %15, %37 : vector<8x32xf32>
    %39 = vector.extract_strided_slice %12 {offsets = [0, 8], sizes = [8, 8], strides = [1, 1]} : vector<8x96xf32> to vector<8x8xf32>
    %40 = vector.extract_strided_slice %12 {offsets = [0, 40], sizes = [8, 8], strides = [1, 1]} : vector<8x96xf32> to vector<8x8xf32>
    %41 = vector.extract_strided_slice %12 {offsets = [0, 72], sizes = [8, 8], strides = [1, 1]} : vector<8x96xf32> to vector<8x8xf32>
    %42 = tpu.transpose %40, [1, 0] : vector<8x8xf32> -> vector<8x8xf32>
    %cst_21 = arith.constant dense<0.000000e+00> : vector<8x8xf32>
    %43 = tpu.matmul %39, %42, %cst_21 {dimension_numbers = #tpu.dot_dimension_numbers<[1], [0], [0], [1], [0, 0, 1, 1], [], []>} : vector<8x8xf32>, vector<8x8xf32>, vector<8x8xf32> -> vector<8x8xf32>
    %cst_22 = arith.constant 0.353553385 : f32
    %44 = vector.broadcast %cst_22 : f32 to vector<8x8xf32>
    %45 = arith.mulf %43, %44 : vector<8x8xf32>
    %46 = vector.broadcast %5 : vector<1x8xf32> to vector<8x8xf32>
    %47 = arith.addf %45, %46 : vector<8x8xf32>
    %cst_23 = arith.constant dense<0xFF800000> : vector<8xf32>
    %48 = vector.multi_reduction <maximumf>, %47, %cst_23 [1] : vector<8x8xf32> to vector<8xf32>
    %49 = vector.shape_cast %48 : vector<8xf32> to vector<8x1xf32>
    %50 = vector.broadcast %49 : vector<8x1xf32> to vector<8x8xf32>
    %51 = arith.subf %47, %50 : vector<8x8xf32>
    %52 = math.exp %51 : vector<8x8xf32>
    %cst_24 = arith.constant dense<0.000000e+00> : vector<8xf32>
    %53 = vector.multi_reduction <add>, %52, %cst_24 [1] : vector<8x8xf32> to vector<8xf32>
    %54 = vector.shape_cast %53 : vector<8xf32> to vector<8x1xf32>
    %55 = tpu.reciprocal %54 {approx = true} : vector<8x1xf32> -> vector<8x1xf32>
    %56 = vector.broadcast %55 : vector<8x1xf32> to vector<8x8xf32>
    %57 = arith.mulf %52, %56 : vector<8x8xf32>
    %cst_25 = arith.constant dense<0.000000e+00> : vector<8x8xf32>
    %58 = tpu.matmul %57, %41, %cst_25 {dimension_numbers = #tpu.dot_dimension_numbers<[1], [0], [0], [1], [0, 0, 1, 1], [], []>} : vector<8x8xf32>, vector<8x8xf32>, vector<8x8xf32> -> vector<8x8xf32>
    %59 = vector.extract_strided_slice %14 {offsets = [8, 0], sizes = [8, 32], strides = [1, 1]} : vector<32x32xf32> to vector<8x32xf32>
    %cst_26 = arith.constant dense<0.000000e+00> : vector<8x32xf32>
    %60 = tpu.matmul %58, %59, %cst_26 {dimension_numbers = #tpu.dot_dimension_numbers<[1], [0], [0], [1], [0, 0, 1, 1], [], []>} : vector<8x8xf32>, vector<8x32xf32>, vector<8x32xf32> -> vector<8x32xf32>
    %61 = arith.addf %38, %60 : vector<8x32xf32>
    %62 = vector.extract_strided_slice %12 {offsets = [0, 16], sizes = [8, 8], strides = [1, 1]} : vector<8x96xf32> to vector<8x8xf32>
    %63 = vector.extract_strided_slice %12 {offsets = [0, 48], sizes = [8, 8], strides = [1, 1]} : vector<8x96xf32> to vector<8x8xf32>
    %64 = vector.extract_strided_slice %12 {offsets = [0, 80], sizes = [8, 8], strides = [1, 1]} : vector<8x96xf32> to vector<8x8xf32>
    %65 = tpu.transpose %63, [1, 0] : vector<8x8xf32> -> vector<8x8xf32>
    %cst_27 = arith.constant dense<0.000000e+00> : vector<8x8xf32>
    %66 = tpu.matmul %62, %65, %cst_27 {dimension_numbers = #tpu.dot_dimension_numbers<[1], [0], [0], [1], [0, 0, 1, 1], [], []>} : vector<8x8xf32>, vector<8x8xf32>, vector<8x8xf32> -> vector<8x8xf32>
    %cst_28 = arith.constant 0.353553385 : f32
    %67 = vector.broadcast %cst_28 : f32 to vector<8x8xf32>
    %68 = arith.mulf %66, %67 : vector<8x8xf32>
    %69 = vector.broadcast %5 : vector<1x8xf32> to vector<8x8xf32>
    %70 = arith.addf %68, %69 : vector<8x8xf32>
    %cst_29 = arith.constant dense<0xFF800000> : vector<8xf32>
    %71 = vector.multi_reduction <maximumf>, %70, %cst_29 [1] : vector<8x8xf32> to vector<8xf32>
    %72 = vector.shape_cast %71 : vector<8xf32> to vector<8x1xf32>
    %73 = vector.broadcast %72 : vector<8x1xf32> to vector<8x8xf32>
    %74 = arith.subf %70, %73 : vector<8x8xf32>
    %75 = math.exp %74 : vector<8x8xf32>
    %cst_30 = arith.constant dense<0.000000e+00> : vector<8xf32>
    %76 = vector.multi_reduction <add>, %75, %cst_30 [1] : vector<8x8xf32> to vector<8xf32>
    %77 = vector.shape_cast %76 : vector<8xf32> to vector<8x1xf32>
    %78 = tpu.reciprocal %77 {approx = true} : vector<8x1xf32> -> vector<8x1xf32>
    %79 = vector.broadcast %78 : vector<8x1xf32> to vector<8x8xf32>
    %80 = arith.mulf %75, %79 : vector<8x8xf32>
    %cst_31 = arith.constant dense<0.000000e+00> : vector<8x8xf32>
    %81 = tpu.matmul %80, %64, %cst_31 {dimension_numbers = #tpu.dot_dimension_numbers<[1], [0], [0], [1], [0, 0, 1, 1], [], []>} : vector<8x8xf32>, vector<8x8xf32>, vector<8x8xf32> -> vector<8x8xf32>
    %82 = vector.extract_strided_slice %14 {offsets = [16, 0], sizes = [8, 32], strides = [1, 1]} : vector<32x32xf32> to vector<8x32xf32>
    %cst_32 = arith.constant dense<0.000000e+00> : vector<8x32xf32>
    %83 = tpu.matmul %81, %82, %cst_32 {dimension_numbers = #tpu.dot_dimension_numbers<[1], [0], [0], [1], [0, 0, 1, 1], [], []>} : vector<8x8xf32>, vector<8x32xf32>, vector<8x32xf32> -> vector<8x32xf32>
    %84 = arith.addf %61, %83 : vector<8x32xf32>
    %85 = vector.extract_strided_slice %12 {offsets = [0, 24], sizes = [8, 8], strides = [1, 1]} : vector<8x96xf32> to vector<8x8xf32>
    %86 = vector.extract_strided_slice %12 {offsets = [0, 56], sizes = [8, 8], strides = [1, 1]} : vector<8x96xf32> to vector<8x8xf32>
    %87 = vector.extract_strided_slice %12 {offsets = [0, 88], sizes = [8, 8], strides = [1, 1]} : vector<8x96xf32> to vector<8x8xf32>
    %88 = tpu.transpose %86, [1, 0] : vector<8x8xf32> -> vector<8x8xf32>
    %cst_33 = arith.constant dense<0.000000e+00> : vector<8x8xf32>
    %89 = tpu.matmul %85, %88, %cst_33 {dimension_numbers = #tpu.dot_dimension_numbers<[1], [0], [0], [1], [0, 0, 1, 1], [], []>} : vector<8x8xf32>, vector<8x8xf32>, vector<8x8xf32> -> vector<8x8xf32>
    %cst_34 = arith.constant 0.353553385 : f32
    %90 = vector.broadcast %cst_34 : f32 to vector<8x8xf32>
    %91 = arith.mulf %89, %90 : vector<8x8xf32>
    %92 = vector.broadcast %5 : vector<1x8xf32> to vector<8x8xf32>
    %93 = arith.addf %91, %92 : vector<8x8xf32>
    %cst_35 = arith.constant dense<0xFF800000> : vector<8xf32>
    %94 = vector.multi_reduction <maximumf>, %93, %cst_35 [1] : vector<8x8xf32> to vector<8xf32>
    %95 = vector.shape_cast %94 : vector<8xf32> to vector<8x1xf32>
    %96 = vector.broadcast %95 : vector<8x1xf32> to vector<8x8xf32>
    %97 = arith.subf %93, %96 : vector<8x8xf32>
    %98 = math.exp %97 : vector<8x8xf32>
    %cst_36 = arith.constant dense<0.000000e+00> : vector<8xf32>
    %99 = vector.multi_reduction <add>, %98, %cst_36 [1] : vector<8x8xf32> to vector<8xf32>
    %100 = vector.shape_cast %99 : vector<8xf32> to vector<8x1xf32>
    %101 = tpu.reciprocal %100 {approx = true} : vector<8x1xf32> -> vector<8x1xf32>
    %102 = vector.broadcast %101 : vector<8x1xf32> to vector<8x8xf32>
    %103 = arith.mulf %98, %102 : vector<8x8xf32>
    %cst_37 = arith.constant dense<0.000000e+00> : vector<8x8xf32>
    %104 = tpu.matmul %103, %87, %cst_37 {dimension_numbers = #tpu.dot_dimension_numbers<[1], [0], [0], [1], [0, 0, 1, 1], [], []>} : vector<8x8xf32>, vector<8x8xf32>, vector<8x8xf32> -> vector<8x8xf32>
    %105 = vector.extract_strided_slice %14 {offsets = [24, 0], sizes = [8, 32], strides = [1, 1]} : vector<32x32xf32> to vector<8x32xf32>
    %cst_38 = arith.constant dense<0.000000e+00> : vector<8x32xf32>
    %106 = tpu.matmul %104, %105, %cst_38 {dimension_numbers = #tpu.dot_dimension_numbers<[1], [0], [0], [1], [0, 0, 1, 1], [], []>} : vector<8x8xf32>, vector<8x32xf32>, vector<8x32xf32> -> vector<8x32xf32>
    %107 = arith.addf %84, %106 : vector<8x32xf32>
    %c0_39 = arith.constant 0 : index
    %c0_40 = arith.constant 0 : index
    %c0_41 = arith.constant 0 : index
    %108 = vector.load %arg11[%c0_39, %c0_40, %c0_41] : memref<1x1x32xf32, #tpu.memory_space<vmem>>, vector<1x1x32xf32>
    %109 = vector.shape_cast %108 : vector<1x1x32xf32> to vector<1x32xf32>
    %110 = vector.broadcast %109 : vector<1x32xf32> to vector<8x32xf32>
    %111 = arith.addf %107, %110 : vector<8x32xf32>
    %112 = arith.addf %111, %3 : vector<8x32xf32>
    %c0_42 = arith.constant 0 : index
    %c0_43 = arith.constant 0 : index
    %c0_44 = arith.constant 0 : index
    %113 = vector.load %arg12[%c0_42, %c0_43, %c0_44] : memref<1x1x32xf32, #tpu.memory_space<vmem>>, vector<1x1x32xf32>
    %114 = vector.shape_cast %113 : vector<1x1x32xf32> to vector<1x32xf32>
    %c0_45 = arith.constant 0 : index
    %c0_46 = arith.constant 0 : index
    %c0_47 = arith.constant 0 : index
    %115 = vector.load %arg13[%c0_45, %c0_46, %c0_47] : memref<1x1x32xf32, #tpu.memory_space<vmem>>, vector<1x1x32xf32>
    %116 = vector.shape_cast %115 : vector<1x1x32xf32> to vector<1x32xf32>
    %cst_48 = arith.constant dense<0.000000e+00> : vector<8xf32>
    %117 = vector.multi_reduction <add>, %112, %cst_48 [1] : vector<8x32xf32> to vector<8xf32>
    %118 = vector.shape_cast %117 : vector<8xf32> to vector<8x1xf32>
    %cst_49 = arith.constant 3.200000e+01 : f32
    %119 = vector.broadcast %cst_49 : f32 to vector<8x1xf32>
    %120 = arith.divf %118, %119 : vector<8x1xf32>
    %121 = vector.broadcast %120 : vector<8x1xf32> to vector<8x32xf32>
    %122 = arith.subf %112, %121 : vector<8x32xf32>
    %123 = arith.mulf %122, %122 : vector<8x32xf32>
    %cst_50 = arith.constant dense<0.000000e+00> : vector<8xf32>
    %124 = vector.multi_reduction <add>, %123, %cst_50 [1] : vector<8x32xf32> to vector<8xf32>
    %125 = vector.shape_cast %124 : vector<8xf32> to vector<8x1xf32>
    %cst_51 = arith.constant 3.200000e+01 : f32
    %126 = vector.broadcast %cst_51 : f32 to vector<8x1xf32>
    %127 = arith.divf %125, %126 : vector<8x1xf32>
    %128 = vector.broadcast %120 : vector<8x1xf32> to vector<8x32xf32>
    %129 = arith.subf %112, %128 : vector<8x32xf32>
    %cst_52 = arith.constant 9.99999996E-13 : f32
    %130 = vector.broadcast %cst_52 : f32 to vector<8x1xf32>
    %131 = arith.addf %127, %130 : vector<8x1xf32>
    %132 = math.rsqrt %131 : vector<8x1xf32>
    %133 = vector.broadcast %132 : vector<8x1xf32> to vector<8x32xf32>
    %134 = arith.mulf %129, %133 : vector<8x32xf32>
    %135 = vector.broadcast %114 : vector<1x32xf32> to vector<8x32xf32>
    %136 = arith.mulf %134, %135 : vector<8x32xf32>
    %137 = vector.broadcast %116 : vector<1x32xf32> to vector<8x32xf32>
    %138 = arith.addf %136, %137 : vector<8x32xf32>
    %c0_53 = arith.constant 0 : index
    %c0_54 = arith.constant 0 : index
    %c0_55 = arith.constant 0 : index
    %139 = vector.load %arg14[%c0_53, %c0_54, %c0_55] : memref<1x32x64xf32, #tpu.memory_space<vmem>>, vector<1x32x64xf32>
    %140 = vector.shape_cast %139 : vector<1x32x64xf32> to vector<32x64xf32>
    %cst_56 = arith.constant dense<0.000000e+00> : vector<8x64xf32>
    %141 = tpu.matmul %138, %140, %cst_56 {dimension_numbers = #tpu.dot_dimension_numbers<[1], [0], [0], [1], [0, 0, 1, 1], [], []>} : vector<8x32xf32>, vector<32x64xf32>, vector<8x64xf32> -> vector<8x64xf32>
    %c0_57 = arith.constant 0 : index
    %c0_58 = arith.constant 0 : index
    %c0_59 = arith.constant 0 : index
    %142 = vector.load %arg15[%c0_57, %c0_58, %c0_59] : memref<1x1x64xf32, #tpu.memory_space<vmem>>, vector<1x1x64xf32>
    %143 = vector.shape_cast %142 : vector<1x1x64xf32> to vector<1x64xf32>
    %144 = vector.broadcast %143 : vector<1x64xf32> to vector<8x64xf32>
    %145 = arith.addf %141, %144 : vector<8x64xf32>
    %cst_60 = arith.constant 5.000000e-01 : f32
    %146 = vector.broadcast %cst_60 : f32 to vector<8x64xf32>
    %147 = arith.mulf %146, %145 : vector<8x64xf32>
    %cst_61 = arith.constant 4.471500e-02 : f32
    %148 = vector.broadcast %cst_61 : f32 to vector<8x64xf32>
    %149 = arith.mulf %148, %145 : vector<8x64xf32>
    %150 = arith.mulf %149, %145 : vector<8x64xf32>
    %151 = arith.mulf %150, %145 : vector<8x64xf32>
    %152 = arith.addf %145, %151 : vector<8x64xf32>
    %cst_62 = arith.constant 0.797884583 : f32
    %153 = vector.broadcast %cst_62 : f32 to vector<8x64xf32>
    %154 = arith.mulf %153, %152 : vector<8x64xf32>
    %155 = math.tanh %154 : vector<8x64xf32>
    %cst_63 = arith.constant 1.000000e+00 : f32
    %156 = vector.broadcast %cst_63 : f32 to vector<8x64xf32>
    %157 = arith.addf %156, %155 : vector<8x64xf32>
    %158 = arith.mulf %147, %157 : vector<8x64xf32>
    %c0_64 = arith.constant 0 : index
    %c0_65 = arith.constant 0 : index
    %c0_66 = arith.constant 0 : index
    %159 = vector.load %arg16[%c0_64, %c0_65, %c0_66] : memref<1x64x32xf32, #tpu.memory_space<vmem>>, vector<1x64x32xf32>
    %160 = vector.shape_cast %159 : vector<1x64x32xf32> to vector<64x32xf32>
    %cst_67 = arith.constant dense<0.000000e+00> : vector<8x32xf32>
    %161 = tpu.matmul %158, %160, %cst_67 {dimension_numbers = #tpu.dot_dimension_numbers<[1], [0], [0], [1], [0, 0, 1, 1], [], []>} : vector<8x64xf32>, vector<64x32xf32>, vector<8x32xf32> -> vector<8x32xf32>
    %c0_68 = arith.constant 0 : index
    %c0_69 = arith.constant 0 : index
    %c0_70 = arith.constant 0 : index
    %162 = vector.load %arg17[%c0_68, %c0_69, %c0_70] : memref<1x1x32xf32, #tpu.memory_space<vmem>>, vector<1x1x32xf32>
    %163 = vector.shape_cast %162 : vector<1x1x32xf32> to vector<1x32xf32>
    %164 = vector.broadcast %163 : vector<1x32xf32> to vector<8x32xf32>
    %165 = arith.addf %161, %164 : vector<8x32xf32>
    %166 = arith.addf %165, %138 : vector<8x32xf32>
    %c0_71 = arith.constant 0 : index
    %c0_72 = arith.constant 0 : index
    %c0_73 = arith.constant 0 : index
    %167 = vector.load %arg18[%c0_71, %c0_72, %c0_73] : memref<1x1x32xf32, #tpu.memory_space<vmem>>, vector<1x1x32xf32>
    %168 = vector.shape_cast %167 : vector<1x1x32xf32> to vector<1x32xf32>
    %c0_74 = arith.constant 0 : index
    %c0_75 = arith.constant 0 : index
    %c0_76 = arith.constant 0 : index
    %169 = vector.load %arg19[%c0_74, %c0_75, %c0_76] : memref<1x1x32xf32, #tpu.memory_space<vmem>>, vector<1x1x32xf32>
    %170 = vector.shape_cast %169 : vector<1x1x32xf32> to vector<1x32xf32>
    %cst_77 = arith.constant dense<0.000000e+00> : vector<8xf32>
    %171 = vector.multi_reduction <add>, %166, %cst_77 [1] : vector<8x32xf32> to vector<8xf32>
    %172 = vector.shape_cast %171 : vector<8xf32> to vector<8x1xf32>
    %cst_78 = arith.constant 3.200000e+01 : f32
    %173 = vector.broadcast %cst_78 : f32 to vector<8x1xf32>
    %174 = arith.divf %172, %173 : vector<8x1xf32>
    %175 = vector.broadcast %174 : vector<8x1xf32> to vector<8x32xf32>
    %176 = arith.subf %166, %175 : vector<8x32xf32>
    %177 = arith.mulf %176, %176 : vector<8x32xf32>
    %cst_79 = arith.constant dense<0.000000e+00> : vector<8xf32>
    %178 = vector.multi_reduction <add>, %177, %cst_79 [1] : vector<8x32xf32> to vector<8xf32>
    %179 = vector.shape_cast %178 : vector<8xf32> to vector<8x1xf32>
    %cst_80 = arith.constant 3.200000e+01 : f32
    %180 = vector.broadcast %cst_80 : f32 to vector<8x1xf32>
    %181 = arith.divf %179, %180 : vector<8x1xf32>
    %182 = vector.broadcast %174 : vector<8x1xf32> to vector<8x32xf32>
    %183 = arith.subf %166, %182 : vector<8x32xf32>
    %cst_81 = arith.constant 9.99999996E-13 : f32
    %184 = vector.broadcast %cst_81 : f32 to vector<8x1xf32>
    %185 = arith.addf %181, %184 : vector<8x1xf32>
    %186 = math.rsqrt %185 : vector<8x1xf32>
    %187 = vector.broadcast %186 : vector<8x1xf32> to vector<8x32xf32>
    %188 = arith.mulf %183, %187 : vector<8x32xf32>
    %189 = vector.broadcast %168 : vector<1x32xf32> to vector<8x32xf32>
    %190 = arith.mulf %188, %189 : vector<8x32xf32>
    %191 = vector.broadcast %170 : vector<1x32xf32> to vector<8x32xf32>
    %192 = arith.addf %190, %191 : vector<8x32xf32>
    %c0_82 = arith.constant 0 : index
    %c0_83 = arith.constant 0 : index
    %193 = vector.load %arg21[%c0_82, %c0_83] : memref<8x32xf32, #tpu.memory_space<vmem>>, vector<8x32xf32>
    tpu.vector_store %arg21[%c0_82, %c0_83], %192 {strides = array<i32>} : memref<8x32xf32, #tpu.memory_space<vmem>>, vector<8x32xf32>,
    %c0_84 = arith.constant 0 : index
    %c0_85 = arith.constant 0 : index
    %194 = vector.load %arg20[%c0_84, %c0_85] : memref<8x32xf32, #tpu.memory_space<vmem>>, vector<8x32xf32>
    tpu.vector_store %arg20[%c0_84, %c0_85], %192 {strides = array<i32>} : memref<8x32xf32, #tpu.memory_space<vmem>>, vector<8x32xf32>,
    return
  }
  func.func @transform_0(%arg0: i32, %arg1: i32) -> (i32, i32) {
    %c0_i32 = arith.constant 0 : i32
    %c0_i32_0 = arith.constant 0 : i32
    return %arg0, %c0_i32 : i32, i32
  }
  func.func @transform_1(%arg0: i32, %arg1: i32) -> (i32, i32) {
    %c0_i32 = arith.constant 0 : i32
    %c0_i32_0 = arith.constant 0 : i32
    return %arg0, %c0_i32 : i32, i32
  }
  func.func @transform_2(%arg0: i32, %arg1: i32) -> (i32, i32) {
    %c0_i32 = arith.constant 0 : i32
    %c0_i32_0 = arith.constant 0 : i32
    %c0_i32_1 = arith.constant 0 : i32
    return %c0_i32, %c0_i32_0 : i32, i32
  }
  func.func @transform_3(%arg0: i32, %arg1: i32) -> (i32, i32, i32) {
    %c0_i32 = arith.constant 0 : i32
    %c0_i32_0 = arith.constant 0 : i32
    %c0_i32_1 = arith.constant 0 : i32
    return %arg0, %c0_i32, %c0_i32_0 : i32, i32, i32
  }
  func.func @transform_4(%arg0: i32, %arg1: i32) -> (i32, i32) {
    %c0_i32 = arith.constant 0 : i32
    %c0_i32_0 = arith.constant 0 : i32
    %c0_i32_1 = arith.constant 0 : i32
    return %c0_i32, %c0_i32_0 : i32, i32
  }
  func.func @transform_5(%arg0: i32, %arg1: i32) -> (i32, i32) {
    %c0_i32 = arith.constant 0 : i32
    %c0_i32_0 = arith.constant 0 : i32
    %c0_i32_1 = arith.constant 0 : i32
    return %c0_i32, %c0_i32_0 : i32, i32
  }
  func.func @transform_6(%arg0: i32, %arg1: i32) -> (i32, i32, i32) {
    %c0_i32 = arith.constant 0 : i32
    %c0_i32_0 = arith.constant 0 : i32
    %c0_i32_1 = arith.constant 0 : i32
    return %arg1, %c0_i32, %c0_i32_0 : i32, i32, i32
  }
  func.func @transform_7(%arg0: i32, %arg1: i32) -> (i32, i32, i32) {
    %c0_i32 = arith.constant 0 : i32
    %c0_i32_0 = arith.constant 0 : i32
    %c0_i32_1 = arith.constant 0 : i32
    return %arg1, %c0_i32, %c0_i32_0 : i32, i32, i32
  }
  func.func @transform_8(%arg0: i32, %arg1: i32) -> (i32, i32, i32) {
    %c0_i32 = arith.constant 0 : i32
    %c0_i32_0 = arith.constant 0 : i32
    %c0_i32_1 = arith.constant 0 : i32
    return %arg1, %c0_i32, %c0_i32_0 : i32, i32, i32
  }
  func.func @transform_9(%arg0: i32, %arg1: i32) -> (i32, i32, i32) {
    %c0_i32 = arith.constant 0 : i32
    %c0_i32_0 = arith.constant 0 : i32
    %c0_i32_1 = arith.constant 0 : i32
    return %arg1, %c0_i32, %c0_i32_0 : i32, i32, i32
  }
  func.func @transform_10(%arg0: i32, %arg1: i32) -> (i32, i32, i32) {
    %c0_i32 = arith.constant 0 : i32
    %c0_i32_0 = arith.constant 0 : i32
    %c0_i32_1 = arith.constant 0 : i32
    return %arg1, %c0_i32, %c0_i32_0 : i32, i32, i32
  }
  func.func @transform_11(%arg0: i32, %arg1: i32) -> (i32, i32, i32) {
    %c0_i32 = arith.constant 0 : i32
    %c0_i32_0 = arith.constant 0 : i32
    %c0_i32_1 = arith.constant 0 : i32
    return %arg1, %c0_i32, %c0_i32_0 : i32, i32, i32
  }
  func.func @transform_12(%arg0: i32, %arg1: i32) -> (i32, i32, i32) {
    %c0_i32 = arith.constant 0 : i32
    %c0_i32_0 = arith.constant 0 : i32
    %c0_i32_1 = arith.constant 0 : i32
    return %arg1, %c0_i32, %c0_i32_0 : i32, i32, i32
  }
  func.func @transform_13(%arg0: i32, %arg1: i32) -> (i32, i32, i32) {
    %c0_i32 = arith.constant 0 : i32
    %c0_i32_0 = arith.constant 0 : i32
    %c0_i32_1 = arith.constant 0 : i32
    return %arg1, %c0_i32, %c0_i32_0 : i32, i32, i32
  }
  func.func @transform_14(%arg0: i32, %arg1: i32) -> (i32, i32, i32) {
    %c0_i32 = arith.constant 0 : i32
    %c0_i32_0 = arith.constant 0 : i32
    %c0_i32_1 = arith.constant 0 : i32
    return %arg1, %c0_i32, %c0_i32_0 : i32, i32, i32
  }
  func.func @transform_15(%arg0: i32, %arg1: i32) -> (i32, i32, i32) {
    %c0_i32 = arith.constant 0 : i32
    %c0_i32_0 = arith.constant 0 : i32
    %c0_i32_1 = arith.constant 0 : i32
    return %arg1, %c0_i32, %c0_i32_0 : i32, i32, i32
  }
  func.func @transform_16(%arg0: i32, %arg1: i32) -> (i32, i32, i32) {
    %c0_i32 = arith.constant 0 : i32
    %c0_i32_0 = arith.constant 0 : i32
    %c0_i32_1 = arith.constant 0 : i32
    return %arg1, %c0_i32, %c0_i32_0 : i32, i32, i32
  }
  func.func @transform_17(%arg0: i32, %arg1: i32) -> (i32, i32, i32) {
    %c0_i32 = arith.constant 0 : i32
    %c0_i32_0 = arith.constant 0 : i32
    %c0_i32_1 = arith.constant 0 : i32
    return %arg1, %c0_i32, %c0_i32_0 : i32, i32, i32
  }
  func.func @transform_18(%arg0: i32, %arg1: i32) -> (i32, i32) {
    %c0_i32 = arith.constant 0 : i32
    %c0_i32_0 = arith.constant 0 : i32
    return %arg0, %c0_i32 : i32, i32
  }
}

</mosaic_0001>

<llo_original>
// kernel: bert_forward.1
$region0: #{bert_forward.1}
  #allocation0 [shape = 'u32[]', space=smem, size = 0x4, offset = 0x4, fixed_abs, tag = 'smem constant byte address 0x4 - core index']
  #allocation1 [shape = 'u32[144,128]{1,0:T(1,128)}', space=vmem, size = 0x12000, scoped, tag = 'internal scratch']
  #allocation2 [shape = 'f32[8,32]{1,0:T(8,128)}', space=vmem, size = 0x1000, scoped, tag = 'scratch operand']
  %s0 = inlined_call_operand.vmem [shape: f32[16,32], index: 0, kind: input, shape index: {}]
  %s1 = inlined_call_operand.vmem [shape: f32[16,32], index: 1, kind: input, shape index: {}]
  %s2 = inlined_call_operand.vmem [shape: f32[8,32], index: 2, kind: input, shape index: {}]
  %s3 = inlined_call_operand.vmem [shape: f32[2,1,8], index: 3, kind: input, shape index: {}]
  %s4 = inlined_call_operand.vmem [shape: f32[1,32], index: 4, kind: input, shape index: {}]
  %s5 = inlined_call_operand.vmem [shape: f32[1,32], index: 5, kind: input, shape index: {}]
  %s6 = inlined_call_operand.vmem [shape: f32[2,32,96], index: 6, kind: input, shape index: {}]
  %s7 = inlined_call_operand.vmem [shape: f32[2,1,96], index: 7, kind: input, shape index: {}]
  %s8 = inlined_call_operand.vmem [shape: f32[2,32,32], index: 8, kind: input, shape index: {}]
  %s9 = inlined_call_operand.vmem [shape: f32[2,1,32], index: 9, kind: input, shape index: {}]
  %s10 = inlined_call_operand.vmem [shape: f32[2,1,32], index: 10, kind: input, shape index: {}]
  %s11 = inlined_call_operand.vmem [shape: f32[2,1,32], index: 11, kind: input, shape index: {}]
  %s12 = inlined_call_operand.vmem [shape: f32[2,32,64], index: 12, kind: input, shape index: {}]
  %s13 = inlined_call_operand.vmem [shape: f32[2,1,64], index: 13, kind: input, shape index: {}]
  %s14 = inlined_call_operand.vmem [shape: f32[2,64,32], index: 14, kind: input, shape index: {}]
  %s15 = inlined_call_operand.vmem [shape: f32[2,1,32], index: 15, kind: input, shape index: {}]
  %s16 = inlined_call_operand.vmem [shape: f32[2,1,32], index: 16, kind: input, shape index: {}]
  %s17 = inlined_call_operand.vmem [shape: f32[2,1,32], index: 17, kind: input, shape index: {}]
  %s18 = inlined_call_operand.hbm [shape: f32[16,32], index: 18, kind: output, shape index: {}]
  %s19 = sld [smem:[#allocation0]]
  $region109: #{bert_forward.1} parent=0
    _
  %s21 = ssub.s32 1, %s19
  %s22 = scalar_select 0, %s21, %s19
  $region1: #{bert_forward.1} parent=0
    #allocation3 [shape = 'u8[8192]{0}', space=vmem, size = 0x2000, scoped, tag = 'output window, operand 0']
    #allocation4 [shape = 's32[2]{0}', space=sflag, size = 0x8, scoped, tag = 'scoped memory for bert_forward.1']
    %23 = vsyncpa [#allocation4], 0
    %s24 = scalar_lea.sflag [#allocation4], 1
    %25 = vsyncpa %s24, 0
    loop: start=0, step=1, limit=6
    $region2: #{bert_forward.1} parent=1 // loop_pre_header
      _
    $region3: #{bert_forward.1} parent=1 // loop_header
      %s27 = sphi 0, %s31
      %p28 = scmp.ge.s32.totalorder %s27, 6
      %s34 = sphi 0, %s46
      %s35 = sphi 0, %s42
      %s36 = sphi 0, %s34
      %s37 = sphi 0, %s35
      %s38 = sphi 0, %s36
      %s39 = sphi 0, %s37
      %s49 = sphi 0, %s51
      %s52 = sphi 0, %s49
      %s53 = sphi 0, %s52
      %s69 = sphi 0, %s53
      %s75 = sphi 0, %s77
      %s78 = sphi 0, %s75
      %s79 = sphi 0, %s78
      %s95 = sphi 0, %s79
      %s99 = sphi 0, %s99
      %s101 = sphi 0, %s99
      %s102 = sphi 0, %s101
      %s116 = sphi 0, %s102
      %s122 = sphi 0, %s124
      %s125 = sphi 0, %s122
      %s126 = sphi 0, %s125
      %s142 = sphi 0, %s126
      %s146 = sphi 0, %s146
      %s148 = sphi 0, %s146
      %s149 = sphi 0, %s148
      %s163 = sphi 0, %s149
      %s167 = sphi 0, %s167
      %s169 = sphi 0, %s167
      %s170 = sphi 0, %s169
      %s184 = sphi 0, %s170
      %s190 = sphi 0, %s192
      %s193 = sphi 0, %s190
      %s194 = sphi 0, %s193
      %s210 = sphi 0, %s194
      %s216 = sphi 0, %s218
      %s219 = sphi 0, %s216
      %s220 = sphi 0, %s219
      %s236 = sphi 0, %s220
      %s242 = sphi 0, %s244
      %s245 = sphi 0, %s242
      %s246 = sphi 0, %s245
      %s262 = sphi 0, %s246
      %s268 = sphi 0, %s270
      %s271 = sphi 0, %s268
      %s272 = sphi 0, %s271
      %s288 = sphi 0, %s272
      %s294 = sphi 0, %s296
      %s297 = sphi 0, %s294
      %s298 = sphi 0, %s297
      %s314 = sphi 0, %s298
      %s320 = sphi 0, %s322
      %s323 = sphi 0, %s320
      %s324 = sphi 0, %s323
      %s340 = sphi 0, %s324
      %s346 = sphi 0, %s348
      %s349 = sphi 0, %s346
      %s350 = sphi 0, %s349
      %s366 = sphi 0, %s350
      %s372 = sphi 0, %s374
      %s375 = sphi 0, %s372
      %s376 = sphi 0, %s375
      %s392 = sphi 0, %s376
      %s398 = sphi 0, %s400
      %s401 = sphi 0, %s398
      %s402 = sphi 0, %s401
      %s418 = sphi 0, %s402
      %s424 = sphi 0, %s426
      %s427 = sphi 0, %s424
      %s428 = sphi 0, %s427
      %s444 = sphi 0, %s428
      %s450 = sphi 0, %s452
      %s453 = sphi 0, %s450
      %s454 = sphi 0, %s453
      %s470 = sphi 0, %s454
      %s476 = sphi 0, %s478
      %s479 = sphi 0, %s476
      %s480 = sphi 0, %s479
      %s496 = sphi 0, %s480
      %s502 = sphi 0, %s504
      %s505 = sphi 0, %s502
      %s506 = sphi 0, %s505
      %s522 = sphi 0, %s506
    $region4: #{bert_forward.1} parent=1 // loop_header_branch
      %30 = sbr.rel (%p28) target = $region8
    $region5: #{bert_forward.1} parent=1 // loop_body
      %s32 = ssub.s32 %s27, 1
      %s33 = ssub.s32 %s27, 2
      %s40 = sadd.s32 1, %s35
      %p41 = scmp.ge.s32.totalorder %s40, 2
      %s42 = scalar_select %p41, 0, %s40
      %s43 = sadd.s32 1, %s34
      %s44 = scalar_select %p41, %s43, %s34
      %p45 = scmp.ge.s32.totalorder %s44, 2
      %s46 = scalar_select %p45, 0, %s44
      %s47 = ssub.s32 %s34, %s46
      %p48 = scmp.eq.s32.totalorder %s47, 0
      %s50 = sadd.s32 %s49, 1
      %s51 = scalar_select %p48, %s49, %s50
      %p54 = pneg %p48
      %p55 = scmp.eq.s32.totalorder %s27, 3
      %p56 = por %p54, %p55
      %p57 = scmp.ne.s32.totalorder %s49, %s52
      %p58 = scmp.eq.s32.totalorder %s27, 0
      %p59 = por %p57, %p58
      %p60 = scmp.ne.s32.totalorder %s49, %s52
      %p61 = scmp.eq.s32.totalorder %s32, 3
      %p62 = por %p60, %p61
      %p63 = scmp.ne.s32.totalorder %s52, %s53
      %p64 = scmp.eq.s32.totalorder %s32, 0
      %p65 = por %p63, %p64
      %p66 = scmp.ne.s32.totalorder %s52, %s53
      %p67 = scmp.eq.s32.totalorder %s33, 3
      %p68 = por %p66, %p67
      %p70 = scmp.ne.s32.totalorder %s53, %s69
      %p71 = scmp.eq.s32.totalorder %s33, 0
      %p72 = por %p70, %p71
      %s73 = ssub.s32 %s34, %s46
      %p74 = scmp.eq.s32.totalorder %s73, 0
      %s76 = sadd.s32 %s75, 1
      %s77 = scalar_select %p74, %s75, %s76
      %p80 = pneg %p74
      %p81 = scmp.eq.s32.totalorder %s27, 3
      %p82 = por %p80, %p81
      %p83 = scmp.ne.s32.totalorder %s75, %s78
      %p84 = scmp.eq.s32.totalorder %s27, 0
      %p85 = por %p83, %p84
      %p86 = scmp.ne.s32.totalorder %s75, %s78
      %p87 = scmp.eq.s32.totalorder %s32, 3
      %p88 = por %p86, %p87
      %p89 = scmp.ne.s32.totalorder %s78, %s79
      %p90 = scmp.eq.s32.totalorder %s32, 0
      %p91 = por %p89, %p90
      %p92 = scmp.ne.s32.totalorder %s78, %s79
      %p93 = scmp.eq.s32.totalorder %s33, 3
      %p94 = por %p92, %p93
      %p96 = scmp.ne.s32.totalorder %s79, %s95
      %p97 = scmp.eq.s32.totalorder %s33, 0
      %p98 = por %p96, %p97
      %s100 = sadd.s32 %s99, 1
      %p103 = scmp.eq.s32.totalorder %s27, 3
      %p104 = scmp.ne.s32.totalorder %s99, %s101
      %p105 = scmp.eq.s32.totalorder %s27, 0
      %p106 = por %p104, %p105
      %p107 = scmp.ne.s32.totalorder %s99, %s101
      %p108 = scmp.eq.s32.totalorder %s32, 3
      %p109 = por %p107, %p108
      %p110 = scmp.ne.s32.totalorder %s101, %s102
      %p111 = scmp.eq.s32.totalorder %s32, 0
      %p112 = por %p110, %p111
      %p113 = scmp.ne.s32.totalorder %s101, %s102
      %p114 = scmp.eq.s32.totalorder %s33, 3
      %p115 = por %p113, %p114
      %p117 = scmp.ne.s32.totalorder %s102, %s116
      %p118 = scmp.eq.s32.totalorder %s33, 0
      %p119 = por %p117, %p118
      %s120 = ssub.s32 %s34, %s46
      %p121 = scmp.eq.s32.totalorder %s120, 0
      %s123 = sadd.s32 %s122, 1
      %s124 = scalar_select %p121, %s122, %s123
      %p127 = pneg %p121
      %p128 = scmp.eq.s32.totalorder %s27, 3
      %p129 = por %p127, %p128
      %p130 = scmp.ne.s32.totalorder %s122, %s125
      %p131 = scmp.eq.s32.totalorder %s27, 0
      %p132 = por %p130, %p131
      %p133 = scmp.ne.s32.totalorder %s122, %s125
      %p134 = scmp.eq.s32.totalorder %s32, 3
      %p135 = por %p133, %p134
      %p136 = scmp.ne.s32.totalorder %s125, %s126
      %p137 = scmp.eq.s32.totalorder %s32, 0
      %p138 = por %p136, %p137
      %p139 = scmp.ne.s32.totalorder %s125, %s126
      %p140 = scmp.eq.s32.totalorder %s33, 3
      %p141 = por %p139, %p140
      %p143 = scmp.ne.s32.totalorder %s126, %s142
      %p144 = scmp.eq.s32.totalorder %s33, 0
      %p145 = por %p143, %p144
      %s147 = sadd.s32 %s146, 1
      %p150 = scmp.eq.s32.totalorder %s27, 3
      %p151 = scmp.ne.s32.totalorder %s146, %s148
      %p152 = scmp.eq.s32.totalorder %s27, 0
      %p153 = por %p151, %p152
      %p154 = scmp.ne.s32.totalorder %s146, %s148
      %p155 = scmp.eq.s32.totalorder %s32, 3
      %p156 = por %p154, %p155
      %p157 = scmp.ne.s32.totalorder %s148, %s149
      %p158 = scmp.eq.s32.totalorder %s32, 0
      %p159 = por %p157, %p158
      %p160 = scmp.ne.s32.totalorder %s148, %s149
      %p161 = scmp.eq.s32.totalorder %s33, 3
      %p162 = por %p160, %p161
      %p164 = scmp.ne.s32.totalorder %s149, %s163
      %p165 = scmp.eq.s32.totalorder %s33, 0
      %p166 = por %p164, %p165
      %s168 = sadd.s32 %s167, 1
      %p171 = scmp.eq.s32.totalorder %s27, 3
      %p172 = scmp.ne.s32.totalorder %s167, %s169
      %p173 = scmp.eq.s32.totalorder %s27, 0
      %p174 = por %p172, %p173
      %p175 = scmp.ne.s32.totalorder %s167, %s169
      %p176 = scmp.eq.s32.totalorder %s32, 3
      %p177 = por %p175, %p176
      %p178 = scmp.ne.s32.totalorder %s169, %s170
      %p179 = scmp.eq.s32.totalorder %s32, 0
      %p180 = por %p178, %p179
      %p181 = scmp.ne.s32.totalorder %s169, %s170
      %p182 = scmp.eq.s32.totalorder %s33, 3
      %p183 = por %p181, %p182
      %p185 = scmp.ne.s32.totalorder %s170, %s184
      %p186 = scmp.eq.s32.totalorder %s33, 0
      %p187 = por %p185, %p186
      %s188 = ssub.s32 %s35, %s42
      %p189 = scmp.eq.s32.totalorder %s188, 0
      %s191 = sadd.s32 %s190, 1
      %s192 = scalar_select %p189, %s190, %s191
      %p195 = pneg %p189
      %p196 = scmp.eq.s32.totalorder %s27, 3
      %p197 = por %p195, %p196
      %p198 = scmp.ne.s32.totalorder %s190, %s193
      %p199 = scmp.eq.s32.totalorder %s27, 0
      %p200 = por %p198, %p199
      %p201 = scmp.ne.s32.totalorder %s190, %s193
      %p202 = scmp.eq.s32.totalorder %s32, 3
      %p203 = por %p201, %p202
      %p204 = scmp.ne.s32.totalorder %s193, %s194
      %p205 = scmp.eq.s32.totalorder %s32, 0
      %p206 = por %p204, %p205
      %p207 = scmp.ne.s32.totalorder %s193, %s194
      %p208 = scmp.eq.s32.totalorder %s33, 3
      %p209 = por %p207, %p208
      %p211 = scmp.ne.s32.totalorder %s194, %s210
      %p212 = scmp.eq.s32.totalorder %s33, 0
      %p213 = por %p211, %p212
      %s214 = ssub.s32 %s35, %s42
      %p215 = scmp.eq.s32.totalorder %s214, 0
      %s217 = sadd.s32 %s216, 1
      %s218 = scalar_select %p215, %s216, %s217
      %p221 = pneg %p215
      %p222 = scmp.eq.s32.totalorder %s27, 3
      %p223 = por %p221, %p222
      %p224 = scmp.ne.s32.totalorder %s216, %s219
      %p225 = scmp.eq.s32.totalorder %s27, 0
      %p226 = por %p224, %p225
      %p227 = scmp.ne.s32.totalorder %s216, %s219
      %p228 = scmp.eq.s32.totalorder %s32, 3
      %p229 = por %p227, %p228
      %p230 = scmp.ne.s32.totalorder %s219, %s220
      %p231 = scmp.eq.s32.totalorder %s32, 0
      %p232 = por %p230, %p231
      %p233 = scmp.ne.s32.totalorder %s219, %s220
      %p234 = scmp.eq.s32.totalorder %s33, 3
      %p235 = por %p233, %p234
      %p237 = scmp.ne.s32.totalorder %s220, %s236
      %p238 = scmp.eq.s32.totalorder %s33, 0
      %p239 = por %p237, %p238
      %s240 = ssub.s32 %s35, %s42
      %p241 = scmp.eq.s32.totalorder %s240, 0
      %s243 = sadd.s32 %s242, 1
      %s244 = scalar_select %p241, %s242, %s243
      %p247 = pneg %p241
      %p248 = scmp.eq.s32.totalorder %s27, 3
      %p249 = por %p247, %p248
      %p250 = scmp.ne.s32.totalorder %s242, %s245
      %p251 = scmp.eq.s32.totalorder %s27, 0
      %p252 = por %p250, %p251
      %p253 = scmp.ne.s32.totalorder %s242, %s245
      %p254 = scmp.eq.s32.totalorder %s32, 3
      %p255 = por %p253, %p254
      %p256 = scmp.ne.s32.totalorder %s245, %s246
      %p257 = scmp.eq.s32.totalorder %s32, 0
      %p258 = por %p256, %p257
      %p259 = scmp.ne.s32.totalorder %s245, %s246
      %p260 = scmp.eq.s32.totalorder %s33, 3
      %p261 = por %p259, %p260
      %p263 = scmp.ne.s32.totalorder %s246, %s262
      %p264 = scmp.eq.s32.totalorder %s33, 0
      %p265 = por %p263, %p264
      %s266 = ssub.s32 %s35, %s42
      %p267 = scmp.eq.s32.totalorder %s266, 0
      %s269 = sadd.s32 %s268, 1
      %s270 = scalar_select %p267, %s268, %s269
      %p273 = pneg %p267
      %p274 = scmp.eq.s32.totalorder %s27, 3
      %p275 = por %p273, %p274
      %p276 = scmp.ne.s32.totalorder %s268, %s271
      %p277 = scmp.eq.s32.totalorder %s27, 0
      %p278 = por %p276, %p277
      %p279 = scmp.ne.s32.totalorder %s268, %s271
      %p280 = scmp.eq.s32.totalorder %s32, 3
      %p281 = por %p279, %p280
      %p282 = scmp.ne.s32.totalorder %s271, %s272
      %p283 = scmp.eq.s32.totalorder %s32, 0
      %p284 = por %p282, %p283
      %p285 = scmp.ne.s32.totalorder %s271, %s272
      %p286 = scmp.eq.s32.totalorder %s33, 3
      %p287 = por %p285, %p286
      %p289 = scmp.ne.s32.totalorder %s272, %s288
      %p290 = scmp.eq.s32.totalorder %s33, 0
      %p291 = por %p289, %p290
      %s292 = ssub.s32 %s35, %s42
      %p293 = scmp.eq.s32.totalorder %s292, 0
      %s295 = sadd.s32 %s294, 1
      %s296 = scalar_select %p293, %s294, %s295
      %p299 = pneg %p293
      %p300 = scmp.eq.s32.totalorder %s27, 3
      %p301 = por %p299, %p300
      %p302 = scmp.ne.s32.totalorder %s294, %s297
      %p303 = scmp.eq.s32.totalorder %s27, 0
      %p304 = por %p302, %p303
      %p305 = scmp.ne.s32.totalorder %s294, %s297
      %p306 = scmp.eq.s32.totalorder %s32, 3
      %p307 = por %p305, %p306
      %p308 = scmp.ne.s32.totalorder %s297, %s298
      %p309 = scmp.eq.s32.totalorder %s32, 0
      %p310 = por %p308, %p309
      %p311 = scmp.ne.s32.totalorder %s297, %s298
      %p312 = scmp.eq.s32.totalorder %s33, 3
      %p313 = por %p311, %p312
      %p315 = scmp.ne.s32.totalorder %s298, %s314
      %p316 = scmp.eq.s32.totalorder %s33, 0
      %p317 = por %p315, %p316
      %s318 = ssub.s32 %s35, %s42
      %p319 = scmp.eq.s32.totalorder %s318, 0
      %s321 = sadd.s32 %s320, 1
      %s322 = scalar_select %p319, %s320, %s321
      %p325 = pneg %p319
      %p326 = scmp.eq.s32.totalorder %s27, 3
      %p327 = por %p325, %p326
      %p328 = scmp.ne.s32.totalorder %s320, %s323
      %p329 = scmp.eq.s32.totalorder %s27, 0
      %p330 = por %p328, %p329
      %p331 = scmp.ne.s32.totalorder %s320, %s323
      %p332 = scmp.eq.s32.totalorder %s32, 3
      %p333 = por %p331, %p332
      %p334 = scmp.ne.s32.totalorder %s323, %s324
      %p335 = scmp.eq.s32.totalorder %s32, 0
      %p336 = por %p334, %p335
      %p337 = scmp.ne.s32.totalorder %s323, %s324
      %p338 = scmp.eq.s32.totalorder %s33, 3
      %p339 = por %p337, %p338
      %p341 = scmp.ne.s32.totalorder %s324, %s340
      %p342 = scmp.eq.s32.totalorder %s33, 0
      %p343 = por %p341, %p342
      %s344 = ssub.s32 %s35, %s42
      %p345 = scmp.eq.s32.totalorder %s344, 0
      %s347 = sadd.s32 %s346, 1
      %s348 = scalar_select %p345, %s346, %s347
      %p351 = pneg %p345
      %p352 = scmp.eq.s32.totalorder %s27, 3
      %p353 = por %p351, %p352
      %p354 = scmp.ne.s32.totalorder %s346, %s349
      %p355 = scmp.eq.s32.totalorder %s27, 0
      %p356 = por %p354, %p355
      %p357 = scmp.ne.s32.totalorder %s346, %s349
      %p358 = scmp.eq.s32.totalorder %s32, 3
      %p359 = por %p357, %p358
      %p360 = scmp.ne.s32.totalorder %s349, %s350
      %p361 = scmp.eq.s32.totalorder %s32, 0
      %p362 = por %p360, %p361
      %p363 = scmp.ne.s32.totalorder %s349, %s350
      %p364 = scmp.eq.s32.totalorder %s33, 3
      %p365 = por %p363, %p364
      %p367 = scmp.ne.s32.totalorder %s350, %s366
      %p368 = scmp.eq.s32.totalorder %s33, 0
      %p369 = por %p367, %p368
      %s370 = ssub.s32 %s35, %s42
      %p371 = scmp.eq.s32.totalorder %s370, 0
      %s373 = sadd.s32 %s372, 1
      %s374 = scalar_select %p371, %s372, %s373
      %p377 = pneg %p371
      %p378 = scmp.eq.s32.totalorder %s27, 3
      %p379 = por %p377, %p378
      %p380 = scmp.ne.s32.totalorder %s372, %s375
      %p381 = scmp.eq.s32.totalorder %s27, 0
      %p382 = por %p380, %p381
      %p383 = scmp.ne.s32.totalorder %s372, %s375
      %p384 = scmp.eq.s32.totalorder %s32, 3
      %p385 = por %p383, %p384
      %p386 = scmp.ne.s32.totalorder %s375, %s376
      %p387 = scmp.eq.s32.totalorder %s32, 0
      %p388 = por %p386, %p387
      %p389 = scmp.ne.s32.totalorder %s375, %s376
      %p390 = scmp.eq.s32.totalorder %s33, 3
      %p391 = por %p389, %p390
      %p393 = scmp.ne.s32.totalorder %s376, %s392
      %p394 = scmp.eq.s32.totalorder %s33, 0
      %p395 = por %p393, %p394
      %s396 = ssub.s32 %s35, %s42
      %p397 = scmp.eq.s32.totalorder %s396, 0
      %s399 = sadd.s32 %s398, 1
      %s400 = scalar_select %p397, %s398, %s399
      %p403 = pneg %p397
      %p404 = scmp.eq.s32.totalorder %s27, 3
      %p405 = por %p403, %p404
      %p406 = scmp.ne.s32.totalorder %s398, %s401
      %p407 = scmp.eq.s32.totalorder %s27, 0
      %p408 = por %p406, %p407
      %p409 = scmp.ne.s32.totalorder %s398, %s401
      %p410 = scmp.eq.s32.totalorder %s32, 3
      %p411 = por %p409, %p410
      %p412 = scmp.ne.s32.totalorder %s401, %s402
      %p413 = scmp.eq.s32.totalorder %s32, 0
      %p414 = por %p412, %p413
      %p415 = scmp.ne.s32.totalorder %s401, %s402
      %p416 = scmp.eq.s32.totalorder %s33, 3
      %p417 = por %p415, %p416
      %p419 = scmp.ne.s32.totalorder %s402, %s418
      %p420 = scmp.eq.s32.totalorder %s33, 0
      %p421 = por %p419, %p420
      %s422 = ssub.s32 %s35, %s42
      %p423 = scmp.eq.s32.totalorder %s422, 0
      %s425 = sadd.s32 %s424, 1
      %s426 = scalar_select %p423, %s424, %s425
      %p429 = pneg %p423
      %p430 = scmp.eq.s32.totalorder %s27, 3
      %p431 = por %p429, %p430
      %p432 = scmp.ne.s32.totalorder %s424, %s427
      %p433 = scmp.eq.s32.totalorder %s27, 0
      %p434 = por %p432, %p433
      %p435 = scmp.ne.s32.totalorder %s424, %s427
      %p436 = scmp.eq.s32.totalorder %s32, 3
      %p437 = por %p435, %p436
      %p438 = scmp.ne.s32.totalorder %s427, %s428
      %p439 = scmp.eq.s32.totalorder %s32, 0
      %p440 = por %p438, %p439
      %p441 = scmp.ne.s32.totalorder %s427, %s428
      %p442 = scmp.eq.s32.totalorder %s33, 3
      %p443 = por %p441, %p442
      %p445 = scmp.ne.s32.totalorder %s428, %s444
      %p446 = scmp.eq.s32.totalorder %s33, 0
      %p447 = por %p445, %p446
      %s448 = ssub.s32 %s35, %s42
      %p449 = scmp.eq.s32.totalorder %s448, 0
      %s451 = sadd.s32 %s450, 1
      %s452 = scalar_select %p449, %s450, %s451
      %p455 = pneg %p449
      %p456 = scmp.eq.s32.totalorder %s27, 3
      %p457 = por %p455, %p456
      %p458 = scmp.ne.s32.totalorder %s450, %s453
      %p459 = scmp.eq.s32.totalorder %s27, 0
      %p460 = por %p458, %p459
      %p461 = scmp.ne.s32.totalorder %s450, %s453
      %p462 = scmp.eq.s32.totalorder %s32, 3
      %p463 = por %p461, %p462
      %p464 = scmp.ne.s32.totalorder %s453, %s454
      %p465 = scmp.eq.s32.totalorder %s32, 0
      %p466 = por %p464, %p465
      %p467 = scmp.ne.s32.totalorder %s453, %s454
      %p468 = scmp.eq.s32.totalorder %s33, 3
      %p469 = por %p467, %p468
      %p471 = scmp.ne.s32.totalorder %s454, %s470
      %p472 = scmp.eq.s32.totalorder %s33, 0
      %p473 = por %p471, %p472
      %s474 = ssub.s32 %s35, %s42
      %p475 = scmp.eq.s32.totalorder %s474, 0
      %s477 = sadd.s32 %s476, 1
      %s478 = scalar_select %p475, %s476, %s477
      %p481 = pneg %p475
      %p482 = scmp.eq.s32.totalorder %s27, 3
      %p483 = por %p481, %p482
      %p484 = scmp.ne.s32.totalorder %s476, %s479
      %p485 = scmp.eq.s32.totalorder %s27, 0
      %p486 = por %p484, %p485
      %p487 = scmp.ne.s32.totalorder %s476, %s479
      %p488 = scmp.eq.s32.totalorder %s32, 3
      %p489 = por %p487, %p488
      %p490 = scmp.ne.s32.totalorder %s479, %s480
      %p491 = scmp.eq.s32.totalorder %s32, 0
      %p492 = por %p490, %p491
      %p493 = scmp.ne.s32.totalorder %s479, %s480
      %p494 = scmp.eq.s32.totalorder %s33, 3
      %p495 = por %p493, %p494
      %p497 = scmp.ne.s32.totalorder %s480, %s496
      %p498 = scmp.eq.s32.totalorder %s33, 0
      %p499 = por %p497, %p498
      %s500 = ssub.s32 %s34, %s46
      %p501 = scmp.eq.s32.totalorder %s500, 0
      %s503 = sadd.s32 %s502, 1
      %s504 = scalar_select %p501, %s502, %s503
      %p507 = pneg %p501
      %p508 = scmp.eq.s32.totalorder %s27, 3
      %p509 = por %p507, %p508
      %p510 = scmp.ne.s32.totalorder %s502, %s505
      %p511 = scmp.eq.s32.totalorder %s27, 0
      %p512 = por %p510, %p511
      %p513 = scmp.ne.s32.totalorder %s502, %s505
      %p514 = scmp.eq.s32.totalorder %s32, 3
      %p515 = por %p513, %p514
      %p516 = scmp.ne.s32.totalorder %s505, %s506
      %p517 = scmp.eq.s32.totalorder %s32, 0
      %p518 = por %p516, %p517
      %p519 = scmp.ne.s32.totalorder %s505, %s506
      %p520 = scmp.eq.s32.totalorder %s33, 3
      %p521 = por %p519, %p520
      %p523 = scmp.ne.s32.totalorder %s506, %s522
      %p524 = scmp.eq.s32.totalorder %s33, 0
      %p525 = por %p523, %p524
      %p526 = scmp.le.s32.totalorder 1, %s27
      %p527 = scmp.lt.s32.totalorder %s27, 5
      %p528 = pnand %p526, %p527
      %p529 = pneg %p528
      // Predicated region
      $region9: #{bert_forward.1} parent=5 // pred_check
        _
      $region10: #{bert_forward.1} parent=5 // pred_check_branch
        %531 = sbr.rel (%p528) target = $region12
      $region11: #{bert_forward.1} parent=5 // pred_region
        %s532 = ssub.s32 %s27, 1
        // Predicated region
        $region13: #{bert_forward.1} parent=11 // pred_check
          %p533 = pneg %p112
        $region14: #{bert_forward.1} parent=11 // pred_check_branch
          %535 = sbr.rel (%p533) target = $region16
        $region15: #{bert_forward.1} parent=11 // pred_region
          _
        $region16: #{bert_forward.1} parent=11 // pred_fallthru
          _
        // Predicated region
        $region17: #{bert_forward.1} parent=11 // pred_check
          %p536 = pneg %p159
        $region18: #{bert_forward.1} parent=11 // pred_check_branch
          %538 = sbr.rel (%p536) target = $region20
        $region19: #{bert_forward.1} parent=11 // pred_region
          _
        $region20: #{bert_forward.1} parent=11 // pred_fallthru
          _
        // Predicated region
        $region21: #{bert_forward.1} parent=11 // pred_check
          %p539 = pneg %p180
        $region22: #{bert_forward.1} parent=11 // pred_check_branch
          %541 = sbr.rel (%p539) target = $region24
        $region23: #{bert_forward.1} parent=11 // pred_region
          _
        $region24: #{bert_forward.1} parent=11 // pred_fallthru
          _
      $region12: #{bert_forward.1} parent=5 // pred_fallthru
        _
      %p542 = scmp.lt.s32.totalorder %s27, 4
      // Predicated region
      $region25: #{bert_forward.1} parent=5 // pred_check
        %p543 = pneg %p542
      $region26: #{bert_forward.1} parent=5 // pred_check_branch
        %545 = sbr.rel (%p543) target = $region28
      $region27: #{bert_forward.1} parent=5 // pred_region
        // Predicated region
        $region29: #{bert_forward.1} parent=27 // pred_check
          %p546 = pneg %p59
        $region30: #{bert_forward.1} parent=27 // pred_check_branch
          %548 = sbr.rel (%p546) target = $region32
        $region31: #{bert_forward.1} parent=27 // pred_region
          %p549 = scmp.lt.s32.totalorder %s34, 1
          %s550 = scalar_select %p549, %s34, 1
          %s551 = smul.addr %s550, 8
          %s552 = scalar_lea.vmem %s0, %s551
        $region32: #{bert_forward.1} parent=27 // pred_fallthru
          _
        // Predicated region
        $region33: #{bert_forward.1} parent=27 // pred_check
          %p553 = pneg %p85
        $region34: #{bert_forward.1} parent=27 // pred_check_branch
          %555 = sbr.rel (%p553) target = $region36
        $region35: #{bert_forward.1} parent=27 // pred_region
          %p556 = scmp.lt.s32.totalorder %s34, 1
          %s557 = scalar_select %p556, %s34, 1
          %s558 = smul.addr %s557, 8
          %s559 = scalar_lea.vmem %s1, %s558
        $region36: #{bert_forward.1} parent=27 // pred_fallthru
          _
        // Predicated region
        $region37: #{bert_forward.1} parent=27 // pred_check
          %p560 = pneg %p132
        $region38: #{bert_forward.1} parent=27 // pred_check_branch
          %562 = sbr.rel (%p560) target = $region40
        $region39: #{bert_forward.1} parent=27 // pred_region
          %p563 = scmp.lt.s32.totalorder %s34, 1
          %s564 = scalar_select %p563, %s34, 1
          %s565 = scalar_lea.vmem %s3, %s564
        $region40: #{bert_forward.1} parent=27 // pred_fallthru
          _
        // Predicated region
        $region41: #{bert_forward.1} parent=27 // pred_check
          %p566 = pneg %p200
        $region42: #{bert_forward.1} parent=27 // pred_check_branch
          %568 = sbr.rel (%p566) target = $region44
        $region43: #{bert_forward.1} parent=27 // pred_region
          %p569 = scmp.lt.s32.totalorder %s35, 1
          %s570 = scalar_select %p569, %s35, 1
          %s571 = smul.addr %s570, 4
          %s572 = smul.addr %s571, 8
          %s573 = scalar_lea.vmem %s6, %s572
        $region44: #{bert_forward.1} parent=27 // pred_fallthru
          _
        // Predicated region
        $region45: #{bert_forward.1} parent=27 // pred_check
          %p574 = pneg %p226
        $region46: #{bert_forward.1} parent=27 // pred_check_branch
          %576 = sbr.rel (%p574) target = $region48
        $region47: #{bert_forward.1} parent=27 // pred_region
          %p577 = scmp.lt.s32.totalorder %s35, 1
          %s578 = scalar_select %p577, %s35, 1
          %s579 = scalar_lea.vmem %s7, %s578
        $region48: #{bert_forward.1} parent=27 // pred_fallthru
          _
        // Predicated region
        $region49: #{bert_forward.1} parent=27 // pred_check
          %p580 = pneg %p252
        $region50: #{bert_forward.1} parent=27 // pred_check_branch
          %582 = sbr.rel (%p580) target = $region52
        $region51: #{bert_forward.1} parent=27 // pred_region
          %p583 = scmp.lt.s32.totalorder %s35, 1
          %s584 = scalar_select %p583, %s35, 1
          %s585 = smul.addr %s584, 4
          %s586 = smul.addr %s585, 8
          %s587 = scalar_lea.vmem %s8, %s586
        $region52: #{bert_forward.1} parent=27 // pred_fallthru
          _
        // Predicated region
        $region53: #{bert_forward.1} parent=27 // pred_check
          %p588 = pneg %p278
        $region54: #{bert_forward.1} parent=27 // pred_check_branch
          %590 = sbr.rel (%p588) target = $region56
        $region55: #{bert_forward.1} parent=27 // pred_region
          %p591 = scmp.lt.s32.totalorder %s35, 1
          %s592 = scalar_select %p591, %s35, 1
          %s593 = scalar_lea.vmem %s9, %s592
        $region56: #{bert_forward.1} parent=27 // pred_fallthru
          _
        // Predicated region
        $region57: #{bert_forward.1} parent=27 // pred_check
          %p594 = pneg %p304
        $region58: #{bert_forward.1} parent=27 // pred_check_branch
          %596 = sbr.rel (%p594) target = $region60
        $region59: #{bert_forward.1} parent=27 // pred_region
          %p597 = scmp.lt.s32.totalorder %s35, 1
          %s598 = scalar_select %p597, %s35, 1
          %s599 = scalar_lea.vmem %s10, %s598
        $region60: #{bert_forward.1} parent=27 // pred_fallthru
          _
        // Predicated region
        $region61: #{bert_forward.1} parent=27 // pred_check
          %p600 = pneg %p330
        $region62: #{bert_forward.1} parent=27 // pred_check_branch
          %602 = sbr.rel (%p600) target = $region64
        $region63: #{bert_forward.1} parent=27 // pred_region
          %p603 = scmp.lt.s32.totalorder %s35, 1
          %s604 = scalar_select %p603, %s35, 1
          %s605 = scalar_lea.vmem %s11, %s604
        $region64: #{bert_forward.1} parent=27 // pred_fallthru
          _
        // Predicated region
        $region65: #{bert_forward.1} parent=27 // pred_check
          %p606 = pneg %p356
        $region66: #{bert_forward.1} parent=27 // pred_check_branch
          %608 = sbr.rel (%p606) target = $region68
        $region67: #{bert_forward.1} parent=27 // pred_region
          %p609 = scmp.lt.s32.totalorder %s35, 1
          %s610 = scalar_select %p609, %s35, 1
          %s611 = smul.addr %s610, 4
          %s612 = smul.addr %s611, 8
          %s613 = scalar_lea.vmem %s12, %s612
        $region68: #{bert_forward.1} parent=27 // pred_fallthru
          _
        // Predicated region
        $region69: #{bert_forward.1} parent=27 // pred_check
          %p614 = pneg %p382
        $region70: #{bert_forward.1} parent=27 // pred_check_branch
          %616 = sbr.rel (%p614) target = $region72
        $region71: #{bert_forward.1} parent=27 // pred_region
          %p617 = scmp.lt.s32.totalorder %s35, 1
          %s618 = scalar_select %p617, %s35, 1
          %s619 = scalar_lea.vmem %s13, %s618
        $region72: #{bert_forward.1} parent=27 // pred_fallthru
          _
        // Predicated region
        $region73: #{bert_forward.1} parent=27 // pred_check
          %p620 = pneg %p408
        $region74: #{bert_forward.1} parent=27 // pred_check_branch
          %622 = sbr.rel (%p620) target = $region76
        $region75: #{bert_forward.1} parent=27 // pred_region
          %p623 = scmp.lt.s32.totalorder %s35, 1
          %s624 = scalar_select %p623, %s35, 1
          %s625 = smul.addr %s624, 8
          %s626 = smul.addr %s625, 8
          %s627 = scalar_lea.vmem %s14, %s626
        $region76: #{bert_forward.1} parent=27 // pred_fallthru
          _
        // Predicated region
        $region77: #{bert_forward.1} parent=27 // pred_check
          %p628 = pneg %p434
        $region78: #{bert_forward.1} parent=27 // pred_check_branch
          %630 = sbr.rel (%p628) target = $region80
        $region79: #{bert_forward.1} parent=27 // pred_region
          %p631 = scmp.lt.s32.totalorder %s35, 1
          %s632 = scalar_select %p631, %s35, 1
          %s633 = scalar_lea.vmem %s15, %s632
        $region80: #{bert_forward.1} parent=27 // pred_fallthru
          _
        // Predicated region
        $region81: #{bert_forward.1} parent=27 // pred_check
          %p634 = pneg %p460
        $region82: #{bert_forward.1} parent=27 // pred_check_branch
          %636 = sbr.rel (%p634) target = $region84
        $region83: #{bert_forward.1} parent=27 // pred_region
          %p637 = scmp.lt.s32.totalorder %s35, 1
          %s638 = scalar_select %p637, %s35, 1
          %s639 = scalar_lea.vmem %s16, %s638
        $region84: #{bert_forward.1} parent=27 // pred_fallthru
          _
        // Predicated region
        $region85: #{bert_forward.1} parent=27 // pred_check
          %p640 = pneg %p486
        $region86: #{bert_forward.1} parent=27 // pred_check_branch
          %642 = sbr.rel (%p640) target = $region88
        $region87: #{bert_forward.1} parent=27 // pred_region
          %p643 = scmp.lt.s32.totalorder %s35, 1
          %s644 = scalar_select %p643, %s35, 1
          %s645 = scalar_lea.vmem %s17, %s644
        $region88: #{bert_forward.1} parent=27 // pred_fallthru
          _
      $region28: #{bert_forward.1} parent=5 // pred_fallthru
        _
      %p646 = scmp.le.s32.totalorder 1, %s27
      %p647 = scmp.lt.s32.totalorder %s27, 5
      %p648 = pnand %p646, %p647
      %p649 = pneg %p648
      // Predicated region
      $region89: #{bert_forward.1} parent=5 // pred_check
        _
      $region90: #{bert_forward.1} parent=5 // pred_check_branch
        %651 = sbr.rel (%p648) target = $region92
      $region91: #{bert_forward.1} parent=5 // pred_region
        %s652 = ssub.s32 %s27, 1
        %p653 = scmp.lt.s32.totalorder %s36, 1
        %s654 = scalar_select %p653, %s36, 1
        %s655 = smul.addr %s654, 8
        %s656 = scalar_lea.vmem %s0, %s655
        %p657 = pneg %p65
        %p658 = pneg %p62
        %p659 = scmp.lt.s32.totalorder %s36, 1
        %s660 = scalar_select %p659, %s36, 1
        %s661 = smul.addr %s660, 8
        %s662 = scalar_lea.vmem %s1, %s661
        %p663 = pneg %p91
        %p664 = pneg %p88
        %p665 = pneg %p112
        %p666 = pneg %p109
        %p667 = scmp.lt.s32.totalorder %s36, 1
        %s668 = scalar_select %p667, %s36, 1
        %s669 = scalar_lea.vmem %s3, %s668
        %p670 = pneg %p138
        %p671 = pneg %p135
        %p672 = pneg %p159
        %p673 = pneg %p156
        %p674 = pneg %p180
        %p675 = pneg %p177
        %p676 = scmp.lt.s32.totalorder %s37, 1
        %s677 = scalar_select %p676, %s37, 1
        %s678 = smul.addr %s677, 4
        %s679 = smul.addr %s678, 8
        %s680 = scalar_lea.vmem %s6, %s679
        %p681 = pneg %p206
        %p682 = pneg %p203
        %p683 = scmp.lt.s32.totalorder %s37, 1
        %s684 = scalar_select %p683, %s37, 1
        %s685 = scalar_lea.vmem %s7, %s684
        %p686 = pneg %p232
        %p687 = pneg %p229
        %p688 = scmp.lt.s32.totalorder %s37, 1
        %s689 = scalar_select %p688, %s37, 1
        %s690 = smul.addr %s689, 4
        %s691 = smul.addr %s690, 8
        %s692 = scalar_lea.vmem %s8, %s691
        %p693 = pneg %p258
        %p694 = pneg %p255
        %p695 = scmp.lt.s32.totalorder %s37, 1
        %s696 = scalar_select %p695, %s37, 1
        %s697 = scalar_lea.vmem %s9, %s696
        %p698 = pneg %p284
        %p699 = pneg %p281
        %p700 = scmp.lt.s32.totalorder %s37, 1
        %s701 = scalar_select %p700, %s37, 1
        %s702 = scalar_lea.vmem %s10, %s701
        %p703 = pneg %p310
        %p704 = pneg %p307
        %p705 = scmp.lt.s32.totalorder %s37, 1
        %s706 = scalar_select %p705, %s37, 1
        %s707 = scalar_lea.vmem %s11, %s706
        %p708 = pneg %p336
        %p709 = pneg %p333
        %p710 = scmp.lt.s32.totalorder %s37, 1
        %s711 = scalar_select %p710, %s37, 1
        %s712 = smul.addr %s711, 4
        %s713 = smul.addr %s712, 8
        %s714 = scalar_lea.vmem %s12, %s713
        %p715 = pneg %p362
        %p716 = pneg %p359
        %p717 = scmp.lt.s32.totalorder %s37, 1
        %s718 = scalar_select %p717, %s37, 1
        %s719 = scalar_lea.vmem %s13, %s718
        %p720 = pneg %p388
        %p721 = pneg %p385
        %p722 = scmp.lt.s32.totalorder %s37, 1
        %s723 = scalar_select %p722, %s37, 1
        %s724 = smul.addr %s723, 8
        %s725 = smul.addr %s724, 8
        %s726 = scalar_lea.vmem %s14, %s725
        %p727 = pneg %p414
        %p728 = pneg %p411
        %p729 = scmp.lt.s32.totalorder %s37, 1
        %s730 = scalar_select %p729, %s37, 1
        %s731 = scalar_lea.vmem %s15, %s730
        %p732 = pneg %p440
        %p733 = pneg %p437
        %p734 = scmp.lt.s32.totalorder %s37, 1
        %s735 = scalar_select %p734, %s37, 1
        %s736 = scalar_lea.vmem %s16, %s735
        %p737 = pneg %p466
        %p738 = pneg %p463
        %p739 = scmp.lt.s32.totalorder %s37, 1
        %s740 = scalar_select %p739, %s37, 1
        %s741 = scalar_lea.vmem %s17, %s740
        %p742 = pneg %p492
        %p743 = pneg %p489
        %p744 = pneg %p518
        %p745 = pneg %p515
        %s746 = sand.u32 %s505, 1
        %s747 = scalar_lea.sflag [#allocation4], %s746
        %s748 = sand.u32 %s505, 1
        %s749 = smul.addr %s748, 8
        %s750 = scalar_lea.vmem [#allocation3], %s749
        %p751 = scmp.lt.s32.totalorder %s36, 1
        %s752 = scalar_select %p751, %s36, 1
        %s753 = smul.addr %s752, 8
        %s754 = scalar_lea.vmem %s0, %s753
        %p755 = scmp.lt.s32.totalorder %s36, 1
        %s756 = scalar_select %p755, %s36, 1
        %s757 = smul.addr %s756, 8
        %s758 = scalar_lea.vmem %s1, %s757
        %p759 = scmp.lt.s32.totalorder %s36, 1
        %s760 = scalar_select %p759, %s36, 1
        %s761 = scalar_lea.vmem %s3, %s760
        %p762 = scmp.lt.s32.totalorder %s37, 1
        %s763 = scalar_select %p762, %s37, 1
        %s764 = smul.addr %s763, 4
        %s765 = smul.addr %s764, 8
        %s766 = scalar_lea.vmem %s6, %s765
        %p767 = scmp.lt.s32.totalorder %s37, 1
        %s768 = scalar_select %p767, %s37, 1
        %s769 = scalar_lea.vmem %s7, %s768
        %p770 = scmp.lt.s32.totalorder %s37, 1
        %s771 = scalar_select %p770, %s37, 1
        %s772 = smul.addr %s771, 4
        %s773 = smul.addr %s772, 8
        %s774 = scalar_lea.vmem %s8, %s773
        %p775 = scmp.lt.s32.totalorder %s37, 1
        %s776 = scalar_select %p775, %s37, 1
        %s777 = scalar_lea.vmem %s9, %s776
        %p778 = scmp.lt.s32.totalorder %s37, 1
        %s779 = scalar_select %p778, %s37, 1
        %s780 = scalar_lea.vmem %s10, %s779
        %p781 = scmp.lt.s32.totalorder %s37, 1
        %s782 = scalar_select %p781, %s37, 1
        %s783 = scalar_lea.vmem %s11, %s782
        %p784 = scmp.lt.s32.totalorder %s37, 1
        %s785 = scalar_select %p784, %s37, 1
        %s786 = smul.addr %s785, 4
        %s787 = smul.addr %s786, 8
        %s788 = scalar_lea.vmem %s12, %s787
        %p789 = scmp.lt.s32.totalorder %s37, 1
        %s790 = scalar_select %p789, %s37, 1
        %s791 = scalar_lea.vmem %s13, %s790
        %p792 = scmp.lt.s32.totalorder %s37, 1
        %s793 = scalar_select %p792, %s37, 1
        %s794 = smul.addr %s793, 8
        %s795 = smul.addr %s794, 8
        %s796 = scalar_lea.vmem %s14, %s795
        %p797 = scmp.lt.s32.totalorder %s37, 1
        %s798 = scalar_select %p797, %s37, 1
        %s799 = scalar_lea.vmem %s15, %s798
        %p800 = scmp.lt.s32.totalorder %s37, 1
        %s801 = scalar_select %p800, %s37, 1
        %s802 = scalar_lea.vmem %s16, %s801
        %p803 = scmp.lt.s32.totalorder %s37, 1
        %s804 = scalar_select %p803, %s37, 1
        %s805 = scalar_lea.vmem %s17, %s804
        %p806 = scmp.eq.s32.totalorder %s37, 0
        // Predicated region
        $region93: #{bert_forward.1} parent=91 // pred_check
          %p807 = pneg %p806
        $region94: #{bert_forward.1} parent=91 // pred_check_branch
          %809 = sbr.rel (%p807) target = $region96
        $region95: #{bert_forward.1} parent=91 // pred_region
          %v810 = vld [vmem:[%s754] sm:$0xff]
          %v811 = vld [vmem:[%s758] sm:$0xff]
          %v812 = vadd.f32 %v810, %v811
          %v813 = vld [vmem:[%s2] sm:$0xff]
          %v814 = vadd.f32 %v812, %v813
          %v815 = vld [vmem:[%s4] sm:$0x1]
          %v816 = vld [vmem:[%s5] sm:$0x1]
          %vm817 = vcmask 261120
          %v818 = vsel %vm817, %v814, 0.0
          %819 = vadd.xlane.f32.xlu0 %v818
          %v820 = vpop.xlane.xlu0 %819
          %v821 = vrcp.pop 32.0
          %v822 = vmul.f32 %v820, %v821
          %v823 = vsub.f32 %v814, %v822
          %v824 = vmul.f32 %v823, %v823
          %v825 = vsel %vm817, %v824, 0.0
          %826 = vadd.xlane.f32.xlu0 %v825
          %v827 = vpop.xlane.xlu0 %826
          %v828 = vmul.f32 %v827, %v821
          %v829 = vadd.f32 %v828, 1e-12
          %v830 = vrsqrt.pop %v829
          %v831 = vmul.f32 %v823, %v830
          %v833 = vlaneseq
          %v834 = vshrl.u32 %v833, 7
          %v835 = vsub.s32 0, %v834
          %v836 = vrot.slane %v815, %v835
          %v838 = vmul.f32 %v831, %v836
          %v840 = vlaneseq
          %v841 = vshrl.u32 %v840, 7
          %v842 = vsub.s32 0, %v841
          %v843 = vrot.slane %v816, %v842
          %v845 = vadd.f32 %v838, %v843
          %846 = vst.msk [vmem:[#allocation2] sm:$0xff] %vm817, %v845
        $region96: #{bert_forward.1} parent=91 // pred_fallthru
          _
        %v847 = vld [vmem:[#allocation2] sm:$0xff]
        %v848 = vld [vmem:[%s761] sm:$0x1]
        %v849 = vld [vmem:[%s766] sm:$0xff]
        %v850 = vld [vmem:[%s766 + $0x8] sm:$0xff]
        %v851 = vld [vmem:[%s766 + $0x10] sm:$0xff]
        %v852 = vld [vmem:[%s766 + $0x18] sm:$0xff]
        %v853 = vld [vmem:[%s769] sm:$0x1]
        %v855 = vlaneseq
        %v856 = vshrl.u32 %v855, 7
        %v857 = vsub.s32 0, %v856
        %v858 = vrot.slane %v853, %v857
        %vm860 = vcmask 261120
        %v862 = vsel %vm860, %v847, 0
        %864 = vmatprep.subr.mxu0 0.0
        %865 = vmatpush1.msra.mxu0 0.0
        %866 = vmatprep.subr.mxu0 0.0
        %867 = vmatpush1.msra.mxu0 0.0
        %868 = vmatprep.subr.mxu0 0.0
        %869 = vmatpush1.msra.mxu0 0.0
        %870 = vmatprep.subr.mxu0 0.0
        %871 = vmatpush1.msra.mxu0 0.0
        %872 = vmatprep.subr.mxu0 0.0
        %873 = vmatpush1.msra.mxu0 0.0
        %874 = vmatprep.subr.mxu0 0.0
        %875 = vmatpush1.msra.mxu0 0.0
        %876 = vmatprep.subr.mxu0 0.0
        %877 = vmatpush1.msra.mxu0 0.0
        %878 = vmatprep.subr.mxu0 0.0
        %879 = vmatpush1.msra.mxu0 0.0
        %880 = vmatprep.subr.mxu0 0.0
        %881 = vmatpush1.msra.mxu0 0.0
        %882 = vmatprep.subr.mxu0 0.0
        %883 = vmatpush1.msra.mxu0 0.0
        %884 = vmatprep.subr.mxu0 0.0
        %885 = vmatpush1.msra.mxu0 0.0
        %886 = vmatprep.subr.mxu0 0.0
        %887 = vmatpush1.msra.mxu0 0.0
        %888 = vmatprep.subr.mxu0 0.0
        %889 = vmatpush1.msra.mxu0 %v852
        %890 = vmatprep.subr.mxu0 0.0
        %891 = vmatpush1.msra.mxu0 %v851
        %892 = vmatprep.subr.mxu0 0.0
        %893 = vmatpush1.msra.mxu0 %v850
        %894 = vmatprep.subr.mxu0 0.0
        %895 = vmatpush1.msra.mxu0 %v849
        %896 = vmatprep.subr.mxu0 0.0
        %897 = vmatpush2.msra.mxu0 0.0
        %898 = vmatprep.subr.mxu0 0.0
        %899 = vmatpush2.msra.mxu0 0.0
        %900 = vmatprep.subr.mxu0 0.0
        %901 = vmatpush2.msra.mxu0 0.0
        %902 = vmatprep.subr.mxu0 0.0
        %903 = vmatpush2.msra.mxu0 0.0
        %904 = vmatprep.subr.mxu0 0.0
        %905 = vmatpush2.msra.mxu0 0.0
        %906 = vmatprep.subr.mxu0 0.0
        %907 = vmatpush2.msra.mxu0 0.0
        %908 = vmatprep.subr.mxu0 0.0
        %909 = vmatpush2.msra.mxu0 0.0
        %910 = vmatprep.subr.mxu0 0.0
        %911 = vmatpush2.msra.mxu0 0.0
        %912 = vmatprep.subr.mxu0 0.0
        %913 = vmatpush2.msra.mxu0 0.0
        %914 = vmatprep.subr.mxu0 0.0
        %915 = vmatpush2.msra.mxu0 0.0
        %916 = vmatprep.subr.mxu0 0.0
        %917 = vmatpush2.msra.mxu0 0.0
        %918 = vmatprep.subr.mxu0 0.0
        %919 = vmatpush2.msra.mxu0 0.0
        %920 = vmatprep.subr.mxu0 0.0
        %921 = vmatpush2.msra.mxu0 0.0
        %922 = vmatprep.subr.mxu0 0.0
        %923 = vmatpush2.msra.mxu0 0.0
        %924 = vmatprep.subr.mxu0 0.0
        %925 = vmatpush2.msra.mxu0 0.0
        %926 = vmatprep.subr.mxu0 0.0
        %927 = vmatpush2.msra.mxu0 0.0
        %928 = vmatprep.mubr.f32.mxu0 0.0
        %929 = vmatmul.mubr.f32.gmra.mxu0 %v862
        %v930 = vpop.f32.mrf.mxu0
        %v931 = vadd.f32 %v858, %v930
        %v932 = vpop.f32.mrf.mxu0
        %933 = vdwg.mxu0
        %v934 = vld [vmem:[%s774] sm:$0xff]
        %v935 = vld [vmem:[%s774 + $0x8] sm:$0xff]
        %v936 = vld [vmem:[%s774 + $0x10] sm:$0xff]
        %v937 = vld [vmem:[%s774 + $0x18] sm:$0xff]
        %939 = vrot.lane.b32.xlu0 %v931, 96
        %v940 = vpop.permute.xlu0 %939
        %vm941 = vcmask 64512
        %v942 = vsel %vm941, %v931, 0
        %v944 = vsel %vm941, %v940, 0
        %946 = vmatprep.subr.mxu0 0.0
        %947 = vmatpush1.xpose.msra.mxu0 0.0
        %948 = vmatprep.subr.mxu0 0.0
        %949 = vmatpush1.xpose.msra.mxu0 0.0
        %950 = vmatprep.subr.mxu0 0.0
        %951 = vmatpush1.xpose.msra.mxu0 0.0
        %952 = vmatprep.subr.mxu0 0.0
        %953 = vmatpush1.xpose.msra.mxu0 0.0
        %954 = vmatprep.subr.mxu0 0.0
        %955 = vmatpush1.xpose.msra.mxu0 0.0
        %956 = vmatprep.subr.mxu0 0.0
        %957 = vmatpush1.xpose.msra.mxu0 0.0
        %958 = vmatprep.subr.mxu0 0.0
        %959 = vmatpush1.xpose.msra.mxu0 0.0
        %960 = vmatprep.subr.mxu0 0.0
        %961 = vmatpush1.xpose.msra.mxu0 0.0
        %962 = vmatprep.subr.mxu0 0.0
        %963 = vmatpush1.xpose.msra.mxu0 0.0
        %964 = vmatprep.subr.mxu0 0.0
        %965 = vmatpush1.xpose.msra.mxu0 0.0
        %966 = vmatprep.subr.mxu0 0.0
        %967 = vmatpush1.xpose.msra.mxu0 0.0
        %968 = vmatprep.subr.mxu0 0.0
        %969 = vmatpush1.xpose.msra.mxu0 0.0
        %970 = vmatprep.subr.mxu0 0.0
        %971 = vmatpush1.xpose.msra.mxu0 0.0
        %972 = vmatprep.subr.mxu0 0.0
        %973 = vmatpush1.xpose.msra.mxu0 0.0
        %974 = vmatprep.subr.mxu0 0.0
        %975 = vmatpush1.xpose.msra.mxu0 0.0
        %976 = vmatprep.subr.mxu0 0.0
        %977 = vmatpush1.xpose.msra.mxu0 %v944
        %978 = vmatprep.subr.mxu0 0.0
        %979 = vmatpush2.xpose.msra.mxu0 0.0
        %980 = vmatprep.subr.mxu0 0.0
        %981 = vmatpush2.xpose.msra.mxu0 0.0
        %982 = vmatprep.subr.mxu0 0.0
        %983 = vmatpush2.xpose.msra.mxu0 0.0
        %984 = vmatprep.subr.mxu0 0.0
        %985 = vmatpush2.xpose.msra.mxu0 0.0
        %986 = vmatprep.subr.mxu0 0.0
        %987 = vmatpush2.xpose.msra.mxu0 0.0
        %988 = vmatprep.subr.mxu0 0.0
        %989 = vmatpush2.xpose.msra.mxu0 0.0
        %990 = vmatprep.subr.mxu0 0.0
        %991 = vmatpush2.xpose.msra.mxu0 0.0
        %992 = vmatprep.subr.mxu0 0.0
        %993 = vmatpush2.xpose.msra.mxu0 0.0
        %994 = vmatprep.subr.mxu0 0.0
        %995 = vmatpush2.xpose.msra.mxu0 0.0
        %996 = vmatprep.subr.mxu0 0.0
        %997 = vmatpush2.xpose.msra.mxu0 0.0
        %998 = vmatprep.subr.mxu0 0.0
        %999 = vmatpush2.xpose.msra.mxu0 0.0
        %1000 = vmatprep.subr.mxu0 0.0
        %1001 = vmatpush2.xpose.msra.mxu0 0.0
        %1002 = vmatprep.subr.mxu0 0.0
        %1003 = vmatpush2.xpose.msra.mxu0 0.0
        %1004 = vmatprep.subr.mxu0 0.0
        %1005 = vmatpush2.xpose.msra.mxu0 0.0
        %1006 = vmatprep.subr.mxu0 0.0
        %1007 = vmatpush2.xpose.msra.mxu0 0.0
        %1008 = vmatprep.subr.mxu0 0.0
        %1009 = vmatpush2.xpose.msra.mxu0 0.0
        %1010 = vmatprep.mubr.f32.mxu0 0.0
        %1011 = vmatmul.mubr.f32.gmra.mxu0 %v942
        %v1012 = vpop.f32.mrf.mxu0
        %v1013 = vadd.f32 0.0, %v1012
        %v1014 = vpop.f32.mrf.mxu0
        %1015 = vdwg.mxu0
        %v1016 = vmul.f32 %v1013, 0.35355338
        %v1018 = vlaneseq
        %v1019 = vshrl.u32 %v1018, 7
        %v1020 = vsub.s32 0, %v1019
        %v1021 = vrot.slane %v848, %v1020
        %v1023 = vadd.f32 %v1016, %v1021
        %v1024 = vsel %vm941, %v1023, -inf
        %1025 = vmax.xlane.f32.xlu0 %v1024
        %v1026 = vpop.xlane.xlu0 %1025
        %v1027 = vsub.f32 %v1023, %v1026
        %v1028 = vmul.f32 %v1027, 1.442695
        %v1029 = vpow.pop %v1028
        %v1030 = vsel %vm941, %v1029, 0.0
        %1031 = vadd.xlane.f32.xlu0 %v1030
        %v1032 = vpop.xlane.xlu0 %1031
        %v1033 = vrcp.pop %v1032
        %v1034 = vmul.f32 %v1029, %v1033
        %1035 = vrot.lane.b32.xlu0 %v931, 64
        %v1036 = vpop.permute.xlu0 %1035
        %v1039 = vsel %vm941, %v1034, 0
        %1041 = vmatprep.subr.mxu0 0.0
        %1042 = vmatpush1.msra.mxu0 0.0
        %1043 = vmatprep.subr.mxu0 0.0
        %1044 = vmatpush1.msra.mxu0 0.0
        %1045 = vmatprep.subr.mxu0 0.0
        %1046 = vmatpush1.msra.mxu0 0.0
        %1047 = vmatprep.subr.mxu0 0.0
        %1048 = vmatpush1.msra.mxu0 0.0
        %1049 = vmatprep.subr.mxu0 0.0
        %1050 = vmatpush1.msra.mxu0 0.0
        %1051 = vmatprep.subr.mxu0 0.0
        %1052 = vmatpush1.msra.mxu0 0.0
        %1053 = vmatprep.subr.mxu0 0.0
        %1054 = vmatpush1.msra.mxu0 0.0
        %1055 = vmatprep.subr.mxu0 0.0
        %1056 = vmatpush1.msra.mxu0 0.0
        %1057 = vmatprep.subr.mxu0 0.0
        %1058 = vmatpush1.msra.mxu0 0.0
        %1059 = vmatprep.subr.mxu0 0.0
        %1060 = vmatpush1.msra.mxu0 0.0
        %1061 = vmatprep.subr.mxu0 0.0
        %1062 = vmatpush1.msra.mxu0 0.0
        %1063 = vmatprep.subr.mxu0 0.0
        %1064 = vmatpush1.msra.mxu0 0.0
        %1065 = vmatprep.subr.mxu0 0.0
        %1066 = vmatpush1.msra.mxu0 0.0
        %1067 = vmatprep.subr.mxu0 0.0
        %1068 = vmatpush1.msra.mxu0 0.0
        %1069 = vmatprep.subr.mxu0 0.0
        %1070 = vmatpush1.msra.mxu0 0.0
        %1071 = vmatprep.subr.mxu0 0.0
        %1072 = vmatpush1.msra.mxu0 %v1036
        %1073 = vmatprep.subr.mxu0 0.0
        %1074 = vmatpush2.msra.mxu0 0.0
        %1075 = vmatprep.subr.mxu0 0.0
        %1076 = vmatpush2.msra.mxu0 0.0
        %1077 = vmatprep.subr.mxu0 0.0
        %1078 = vmatpush2.msra.mxu0 0.0
        %1079 = vmatprep.subr.mxu0 0.0
        %1080 = vmatpush2.msra.mxu0 0.0
        %1081 = vmatprep.subr.mxu0 0.0
        %1082 = vmatpush2.msra.mxu0 0.0
        %1083 = vmatprep.subr.mxu0 0.0
        %1084 = vmatpush2.msra.mxu0 0.0
        %1085 = vmatprep.subr.mxu0 0.0
        %1086 = vmatpush2.msra.mxu0 0.0
        %1087 = vmatprep.subr.mxu0 0.0
        %1088 = vmatpush2.msra.mxu0 0.0
        %1089 = vmatprep.subr.mxu0 0.0
        %1090 = vmatpush2.msra.mxu0 0.0
        %1091 = vmatprep.subr.mxu0 0.0
        %1092 = vmatpush2.msra.mxu0 0.0
        %1093 = vmatprep.subr.mxu0 0.0
        %1094 = vmatpush2.msra.mxu0 0.0
        %1095 = vmatprep.subr.mxu0 0.0
        %1096 = vmatpush2.msra.mxu0 0.0
        %1097 = vmatprep.subr.mxu0 0.0
        %1098 = vmatpush2.msra.mxu0 0.0
        %1099 = vmatprep.subr.mxu0 0.0
        %1100 = vmatpush2.msra.mxu0 0.0
        %1101 = vmatprep.subr.mxu0 0.0
        %1102 = vmatpush2.msra.mxu0 0.0
        %1103 = vmatprep.subr.mxu0 0.0
        %1104 = vmatpush2.msra.mxu0 0.0
        %1105 = vmatprep.mubr.f32.mxu0 0.0
        %1106 = vmatmul.mubr.f32.gmra.mxu0 %v1039
        %v1107 = vpop.f32.mrf.mxu0
        %v1108 = vadd.f32 0.0, %v1107
        %v1109 = vpop.f32.mrf.mxu0
        %1110 = vdwg.mxu0
        %1111 = vrot.lane.b32.xlu0 %v931, 120
        %v1112 = vpop.permute.xlu0 %1111
        %1113 = vrot.lane.b32.xlu0 %v931, 88
        %v1114 = vpop.permute.xlu0 %1113
        %v1115 = vsel %vm941, %v1112, 0
        %v1117 = vsel %vm941, %v1114, 0
        %1119 = vmatprep.subr.mxu0 0.0
        %1120 = vmatpush1.xpose.msra.mxu0 0.0
        %1121 = vmatprep.subr.mxu0 0.0
        %1122 = vmatpush1.xpose.msra.mxu0 0.0
        %1123 = vmatprep.subr.mxu0 0.0
        %1124 = vmatpush1.xpose.msra.mxu0 0.0
        %1125 = vmatprep.subr.mxu0 0.0
        %1126 = vmatpush1.xpose.msra.mxu0 0.0
        %1127 = vmatprep.subr.mxu0 0.0
        %1128 = vmatpush1.xpose.msra.mxu0 0.0
        %1129 = vmatprep.subr.mxu0 0.0
        %1130 = vmatpush1.xpose.msra.mxu0 0.0
        %1131 = vmatprep.subr.mxu0 0.0
        %1132 = vmatpush1.xpose.msra.mxu0 0.0
        %1133 = vmatprep.subr.mxu0 0.0
        %1134 = vmatpush1.xpose.msra.mxu0 0.0
        %1135 = vmatprep.subr.mxu0 0.0
        %1136 = vmatpush1.xpose.msra.mxu0 0.0
        %1137 = vmatprep.subr.mxu0 0.0
        %1138 = vmatpush1.xpose.msra.mxu0 0.0
        %1139 = vmatprep.subr.mxu0 0.0
        %1140 = vmatpush1.xpose.msra.mxu0 0.0
        %1141 = vmatprep.subr.mxu0 0.0
        %1142 = vmatpush1.xpose.msra.mxu0 0.0
        %1143 = vmatprep.subr.mxu0 0.0
        %1144 = vmatpush1.xpose.msra.mxu0 0.0
        %1145 = vmatprep.subr.mxu0 0.0
        %1146 = vmatpush1.xpose.msra.mxu0 0.0
        %1147 = vmatprep.subr.mxu0 0.0
        %1148 = vmatpush1.xpose.msra.mxu0 0.0
        %1149 = vmatprep.subr.mxu0 0.0
        %1150 = vmatpush1.xpose.msra.mxu0 %v1117
        %1151 = vmatprep.subr.mxu0 0.0
        %1152 = vmatpush2.xpose.msra.mxu0 0.0
        %1153 = vmatprep.subr.mxu0 0.0
        %1154 = vmatpush2.xpose.msra.mxu0 0.0
        %1155 = vmatprep.subr.mxu0 0.0
        %1156 = vmatpush2.xpose.msra.mxu0 0.0
        %1157 = vmatprep.subr.mxu0 0.0
        %1158 = vmatpush2.xpose.msra.mxu0 0.0
        %1159 = vmatprep.subr.mxu0 0.0
        %1160 = vmatpush2.xpose.msra.mxu0 0.0
        %1161 = vmatprep.subr.mxu0 0.0
        %1162 = vmatpush2.xpose.msra.mxu0 0.0
        %1163 = vmatprep.subr.mxu0 0.0
        %1164 = vmatpush2.xpose.msra.mxu0 0.0
        %1165 = vmatprep.subr.mxu0 0.0
        %1166 = vmatpush2.xpose.msra.mxu0 0.0
        %1167 = vmatprep.subr.mxu0 0.0
        %1168 = vmatpush2.xpose.msra.mxu0 0.0
        %1169 = vmatprep.subr.mxu0 0.0
        %1170 = vmatpush2.xpose.msra.mxu0 0.0
        %1171 = vmatprep.subr.mxu0 0.0
        %1172 = vmatpush2.xpose.msra.mxu0 0.0
        %1173 = vmatprep.subr.mxu0 0.0
        %1174 = vmatpush2.xpose.msra.mxu0 0.0
        %1175 = vmatprep.subr.mxu0 0.0
        %1176 = vmatpush2.xpose.msra.mxu0 0.0
        %1177 = vmatprep.subr.mxu0 0.0
        %1178 = vmatpush2.xpose.msra.mxu0 0.0
        %1179 = vmatprep.subr.mxu0 0.0
        %1180 = vmatpush2.xpose.msra.mxu0 0.0
        %1181 = vmatprep.subr.mxu0 0.0
        %1182 = vmatpush2.xpose.msra.mxu0 0.0
        %1183 = vmatprep.mubr.f32.mxu0 0.0
        %1184 = vmatmul.mubr.f32.gmra.mxu0 %v1115
        %v1185 = vpop.f32.mrf.mxu0
        %v1186 = vadd.f32 0.0, %v1185
        %v1187 = vpop.f32.mrf.mxu0
        %1188 = vdwg.mxu0
        %v1189 = vmul.f32 %v1186, 0.35355338
        %v1190 = vadd.f32 %v1189, %v1021
        %v1191 = vsel %vm941, %v1190, -inf
        %1192 = vmax.xlane.f32.xlu0 %v1191
        %v1193 = vpop.xlane.xlu0 %1192
        %v1194 = vsub.f32 %v1190, %v1193
        %v1195 = vmul.f32 %v1194, 1.442695
        %v1196 = vpow.pop %v1195
        %v1197 = vsel %vm941, %v1196, 0.0
        %1198 = vadd.xlane.f32.xlu0 %v1197
        %v1199 = vpop.xlane.xlu0 %1198
        %v1200 = vrcp.pop %v1199
        %v1201 = vmul.f32 %v1196, %v1200
        %1202 = vrot.lane.b32.xlu0 %v931, 56
        %v1203 = vpop.permute.xlu0 %1202
        %v1206 = vsel %vm941, %v1201, 0
        %1208 = vmatprep.subr.mxu0 0.0
        %1209 = vmatpush1.msra.mxu0 0.0
        %1210 = vmatprep.subr.mxu0 0.0
        %1211 = vmatpush1.msra.mxu0 0.0
        %1212 = vmatprep.subr.mxu0 0.0
        %1213 = vmatpush1.msra.mxu0 0.0
        %1214 = vmatprep.subr.mxu0 0.0
        %1215 = vmatpush1.msra.mxu0 0.0
        %1216 = vmatprep.subr.mxu0 0.0
        %1217 = vmatpush1.msra.mxu0 0.0
        %1218 = vmatprep.subr.mxu0 0.0
        %1219 = vmatpush1.msra.mxu0 0.0
        %1220 = vmatprep.subr.mxu0 0.0
        %1221 = vmatpush1.msra.mxu0 0.0
        %1222 = vmatprep.subr.mxu0 0.0
        %1223 = vmatpush1.msra.mxu0 0.0
        %1224 = vmatprep.subr.mxu0 0.0
        %1225 = vmatpush1.msra.mxu0 0.0
        %1226 = vmatprep.subr.mxu0 0.0
        %1227 = vmatpush1.msra.mxu0 0.0
        %1228 = vmatprep.subr.mxu0 0.0
        %1229 = vmatpush1.msra.mxu0 0.0
        %1230 = vmatprep.subr.mxu0 0.0
        %1231 = vmatpush1.msra.mxu0 0.0
        %1232 = vmatprep.subr.mxu0 0.0
        %1233 = vmatpush1.msra.mxu0 0.0
        %1234 = vmatprep.subr.mxu0 0.0
        %1235 = vmatpush1.msra.mxu0 0.0
        %1236 = vmatprep.subr.mxu0 0.0
        %1237 = vmatpush1.msra.mxu0 0.0
        %1238 = vmatprep.subr.mxu0 0.0
        %1239 = vmatpush1.msra.mxu0 %v1203
        %1240 = vmatprep.subr.mxu0 0.0
        %1241 = vmatpush2.msra.mxu0 0.0
        %1242 = vmatprep.subr.mxu0 0.0
        %1243 = vmatpush2.msra.mxu0 0.0
        %1244 = vmatprep.subr.mxu0 0.0
        %1245 = vmatpush2.msra.mxu0 0.0
        %1246 = vmatprep.subr.mxu0 0.0
        %1247 = vmatpush2.msra.mxu0 0.0
        %1248 = vmatprep.subr.mxu0 0.0
        %1249 = vmatpush2.msra.mxu0 0.0
        %1250 = vmatprep.subr.mxu0 0.0
        %1251 = vmatpush2.msra.mxu0 0.0
        %1252 = vmatprep.subr.mxu0 0.0
        %1253 = vmatpush2.msra.mxu0 0.0
        %1254 = vmatprep.subr.mxu0 0.0
        %1255 = vmatpush2.msra.mxu0 0.0
        %1256 = vmatprep.subr.mxu0 0.0
        %1257 = vmatpush2.msra.mxu0 0.0
        %1258 = vmatprep.subr.mxu0 0.0
        %1259 = vmatpush2.msra.mxu0 0.0
        %1260 = vmatprep.subr.mxu0 0.0
        %1261 = vmatpush2.msra.mxu0 0.0
        %1262 = vmatprep.subr.mxu0 0.0
        %1263 = vmatpush2.msra.mxu0 0.0
        %1264 = vmatprep.subr.mxu0 0.0
        %1265 = vmatpush2.msra.mxu0 0.0
        %1266 = vmatprep.subr.mxu0 0.0
        %1267 = vmatpush2.msra.mxu0 0.0
        %1268 = vmatprep.subr.mxu0 0.0
        %1269 = vmatpush2.msra.mxu0 0.0
        %1270 = vmatprep.subr.mxu0 0.0
        %1271 = vmatpush2.msra.mxu0 0.0
        %1272 = vmatprep.mubr.f32.mxu0 0.0
        %1273 = vmatmul.mubr.f32.gmra.mxu0 %v1206
        %v1274 = vpop.f32.mrf.mxu0
        %v1275 = vadd.f32 0.0, %v1274
        %v1276 = vpop.f32.mrf.mxu0
        %1277 = vdwg.mxu0
        %v1279 = vsel %vm941, %v1275, 0
        %1281 = vmatprep.subr.mxu0 0.0
        %1282 = vmatpush1.msra.mxu0 0.0
        %1283 = vmatprep.subr.mxu0 0.0
        %1284 = vmatpush1.msra.mxu0 0.0
        %1285 = vmatprep.subr.mxu0 0.0
        %1286 = vmatpush1.msra.mxu0 0.0
        %1287 = vmatprep.subr.mxu0 0.0
        %1288 = vmatpush1.msra.mxu0 0.0
        %1289 = vmatprep.subr.mxu0 0.0
        %1290 = vmatpush1.msra.mxu0 0.0
        %1291 = vmatprep.subr.mxu0 0.0
        %1292 = vmatpush1.msra.mxu0 0.0
        %1293 = vmatprep.subr.mxu0 0.0
        %1294 = vmatpush1.msra.mxu0 0.0
        %1295 = vmatprep.subr.mxu0 0.0
        %1296 = vmatpush1.msra.mxu0 0.0
        %1297 = vmatprep.subr.mxu0 0.0
        %1298 = vmatpush1.msra.mxu0 0.0
        %1299 = vmatprep.subr.mxu0 0.0
        %1300 = vmatpush1.msra.mxu0 0.0
        %1301 = vmatprep.subr.mxu0 0.0
        %1302 = vmatpush1.msra.mxu0 0.0
        %1303 = vmatprep.subr.mxu0 0.0
        %1304 = vmatpush1.msra.mxu0 0.0
        %1305 = vmatprep.subr.mxu0 0.0
        %1306 = vmatpush1.msra.mxu0 0.0
        %1307 = vmatprep.subr.mxu0 0.0
        %1308 = vmatpush1.msra.mxu0 0.0
        %1309 = vmatprep.subr.mxu0 0.0
        %1310 = vmatpush1.msra.mxu0 0.0
        %1311 = vmatprep.subr.mxu0 0.0
        %1312 = vmatpush1.msra.mxu0 %v935
        %1313 = vmatprep.subr.mxu0 0.0
        %1314 = vmatpush2.msra.mxu0 0.0
        %1315 = vmatprep.subr.mxu0 0.0
        %1316 = vmatpush2.msra.mxu0 0.0
        %1317 = vmatprep.subr.mxu0 0.0
        %1318 = vmatpush2.msra.mxu0 0.0
        %1319 = vmatprep.subr.mxu0 0.0
        %1320 = vmatpush2.msra.mxu0 0.0
        %1321 = vmatprep.subr.mxu0 0.0
        %1322 = vmatpush2.msra.mxu0 0.0
        %1323 = vmatprep.subr.mxu0 0.0
        %1324 = vmatpush2.msra.mxu0 0.0
        %1325 = vmatprep.subr.mxu0 0.0
        %1326 = vmatpush2.msra.mxu0 0.0
        %1327 = vmatprep.subr.mxu0 0.0
        %1328 = vmatpush2.msra.mxu0 0.0
        %1329 = vmatprep.subr.mxu0 0.0
        %1330 = vmatpush2.msra.mxu0 0.0
        %1331 = vmatprep.subr.mxu0 0.0
        %1332 = vmatpush2.msra.mxu0 0.0
        %1333 = vmatprep.subr.mxu0 0.0
        %1334 = vmatpush2.msra.mxu0 0.0
        %1335 = vmatprep.subr.mxu0 0.0
        %1336 = vmatpush2.msra.mxu0 0.0
        %1337 = vmatprep.subr.mxu0 0.0
        %1338 = vmatpush2.msra.mxu0 0.0
        %1339 = vmatprep.subr.mxu0 0.0
        %1340 = vmatpush2.msra.mxu0 0.0
        %1341 = vmatprep.subr.mxu0 0.0
        %1342 = vmatpush2.msra.mxu0 0.0
        %1343 = vmatprep.subr.mxu0 0.0
        %1344 = vmatpush2.msra.mxu0 0.0
        %1345 = vmatprep.mubr.f32.mxu0 0.0
        %1346 = vmatmul.mubr.f32.gmra.mxu0 %v1279
        %v1347 = vpop.f32.mrf.mxu0
        %v1348 = vadd.f32 0.0, %v1347
        %v1349 = vpop.f32.mrf.mxu0
        %1350 = vdwg.mxu0
        %v1352 = vsel %vm941, %v1108, 0
        %1354 = vmatprep.subr.mxu0 0.0
        %1355 = vmatpush1.msra.mxu0 0.0
        %1356 = vmatprep.subr.mxu0 0.0
        %1357 = vmatpush1.msra.mxu0 0.0
        %1358 = vmatprep.subr.mxu0 0.0
        %1359 = vmatpush1.msra.mxu0 0.0
        %1360 = vmatprep.subr.mxu0 0.0
        %1361 = vmatpush1.msra.mxu0 0.0
        %1362 = vmatprep.subr.mxu0 0.0
        %1363 = vmatpush1.msra.mxu0 0.0
        %1364 = vmatprep.subr.mxu0 0.0
        %1365 = vmatpush1.msra.mxu0 0.0
        %1366 = vmatprep.subr.mxu0 0.0
        %1367 = vmatpush1.msra.mxu0 0.0
        %1368 = vmatprep.subr.mxu0 0.0
        %1369 = vmatpush1.msra.mxu0 0.0
        %1370 = vmatprep.subr.mxu0 0.0
        %1371 = vmatpush1.msra.mxu0 0.0
        %1372 = vmatprep.subr.mxu0 0.0
        %1373 = vmatpush1.msra.mxu0 0.0
        %1374 = vmatprep.subr.mxu0 0.0
        %1375 = vmatpush1.msra.mxu0 0.0
        %1376 = vmatprep.subr.mxu0 0.0
        %1377 = vmatpush1.msra.mxu0 0.0
        %1378 = vmatprep.subr.mxu0 0.0
        %1379 = vmatpush1.msra.mxu0 0.0
        %1380 = vmatprep.subr.mxu0 0.0
        %1381 = vmatpush1.msra.mxu0 0.0
        %1382 = vmatprep.subr.mxu0 0.0
        %1383 = vmatpush1.msra.mxu0 0.0
        %1384 = vmatprep.subr.mxu0 0.0
        %1385 = vmatpush1.msra.mxu0 %v934
        %1386 = vmatprep.subr.mxu0 0.0
        %1387 = vmatpush2.msra.mxu0 0.0
        %1388 = vmatprep.subr.mxu0 0.0
        %1389 = vmatpush2.msra.mxu0 0.0
        %1390 = vmatprep.subr.mxu0 0.0
        %1391 = vmatpush2.msra.mxu0 0.0
        %1392 = vmatprep.subr.mxu0 0.0
        %1393 = vmatpush2.msra.mxu0 0.0
        %1394 = vmatprep.subr.mxu0 0.0
        %1395 = vmatpush2.msra.mxu0 0.0
        %1396 = vmatprep.subr.mxu0 0.0
        %1397 = vmatpush2.msra.mxu0 0.0
        %1398 = vmatprep.subr.mxu0 0.0
        %1399 = vmatpush2.msra.mxu0 0.0
        %1400 = vmatprep.subr.mxu0 0.0
        %1401 = vmatpush2.msra.mxu0 0.0
        %1402 = vmatprep.subr.mxu0 0.0
        %1403 = vmatpush2.msra.mxu0 0.0
        %1404 = vmatprep.subr.mxu0 0.0
        %1405 = vmatpush2.msra.mxu0 0.0
        %1406 = vmatprep.subr.mxu0 0.0
        %1407 = vmatpush2.msra.mxu0 0.0
        %1408 = vmatprep.subr.mxu0 0.0
        %1409 = vmatpush2.msra.mxu0 0.0
        %1410 = vmatprep.subr.mxu0 0.0
        %1411 = vmatpush2.msra.mxu0 0.0
        %1412 = vmatprep.subr.mxu0 0.0
        %1413 = vmatpush2.msra.mxu0 0.0
        %1414 = vmatprep.subr.mxu0 0.0
        %1415 = vmatpush2.msra.mxu0 0.0
        %1416 = vmatprep.subr.mxu0 0.0
        %1417 = vmatpush2.msra.mxu0 0.0
        %1418 = vmatprep.mubr.f32.mxu0 0.0
        %1419 = vmatmul.mubr.f32.gmra.mxu0 %v1352
        %v1420 = vpop.f32.mrf.mxu0
        %v1421 = vadd.f32 %v1348, %v1420
        %v1422 = vpop.f32.mrf.mxu0
        %1423 = vdwg.mxu0
        %1424 = vrot.lane.b32.xlu0 %v931, 112
        %v1425 = vpop.permute.xlu0 %1424
        %1426 = vrot.lane.b32.xlu0 %v931, 80
        %v1427 = vpop.permute.xlu0 %1426
        %v1428 = vsel %vm941, %v1425, 0
        %v1430 = vsel %vm941, %v1427, 0
        %1432 = vmatprep.subr.mxu0 0.0
        %1433 = vmatpush1.xpose.msra.mxu0 0.0
        %1434 = vmatprep.subr.mxu0 0.0
        %1435 = vmatpush1.xpose.msra.mxu0 0.0
        %1436 = vmatprep.subr.mxu0 0.0
        %1437 = vmatpush1.xpose.msra.mxu0 0.0
        %1438 = vmatprep.subr.mxu0 0.0
        %1439 = vmatpush1.xpose.msra.mxu0 0.0
        %1440 = vmatprep.subr.mxu0 0.0
        %1441 = vmatpush1.xpose.msra.mxu0 0.0
        %1442 = vmatprep.subr.mxu0 0.0
        %1443 = vmatpush1.xpose.msra.mxu0 0.0
        %1444 = vmatprep.subr.mxu0 0.0
        %1445 = vmatpush1.xpose.msra.mxu0 0.0
        %1446 = vmatprep.subr.mxu0 0.0
        %1447 = vmatpush1.xpose.msra.mxu0 0.0
        %1448 = vmatprep.subr.mxu0 0.0
        %1449 = vmatpush1.xpose.msra.mxu0 0.0
        %1450 = vmatprep.subr.mxu0 0.0
        %1451 = vmatpush1.xpose.msra.mxu0 0.0
        %1452 = vmatprep.subr.mxu0 0.0
        %1453 = vmatpush1.xpose.msra.mxu0 0.0
        %1454 = vmatprep.subr.mxu0 0.0
        %1455 = vmatpush1.xpose.msra.mxu0 0.0
        %1456 = vmatprep.subr.mxu0 0.0
        %1457 = vmatpush1.xpose.msra.mxu0 0.0
        %1458 = vmatprep.subr.mxu0 0.0
        %1459 = vmatpush1.xpose.msra.mxu0 0.0
        %1460 = vmatprep.subr.mxu0 0.0
        %1461 = vmatpush1.xpose.msra.mxu0 0.0
        %1462 = vmatprep.subr.mxu0 0.0
        %1463 = vmatpush1.xpose.msra.mxu0 %v1430
        %1464 = vmatprep.subr.mxu0 0.0
        %1465 = vmatpush2.xpose.msra.mxu0 0.0
        %1466 = vmatprep.subr.mxu0 0.0
        %1467 = vmatpush2.xpose.msra.mxu0 0.0
        %1468 = vmatprep.subr.mxu0 0.0
        %1469 = vmatpush2.xpose.msra.mxu0 0.0
        %1470 = vmatprep.subr.mxu0 0.0
        %1471 = vmatpush2.xpose.msra.mxu0 0.0
        %1472 = vmatprep.subr.mxu0 0.0
        %1473 = vmatpush2.xpose.msra.mxu0 0.0
        %1474 = vmatprep.subr.mxu0 0.0
        %1475 = vmatpush2.xpose.msra.mxu0 0.0
        %1476 = vmatprep.subr.mxu0 0.0
        %1477 = vmatpush2.xpose.msra.mxu0 0.0
        %1478 = vmatprep.subr.mxu0 0.0
        %1479 = vmatpush2.xpose.msra.mxu0 0.0
        %1480 = vmatprep.subr.mxu0 0.0
        %1481 = vmatpush2.xpose.msra.mxu0 0.0
        %1482 = vmatprep.subr.mxu0 0.0
        %1483 = vmatpush2.xpose.msra.mxu0 0.0
        %1484 = vmatprep.subr.mxu0 0.0
        %1485 = vmatpush2.xpose.msra.mxu0 0.0
        %1486 = vmatprep.subr.mxu0 0.0
        %1487 = vmatpush2.xpose.msra.mxu0 0.0
        %1488 = vmatprep.subr.mxu0 0.0
        %1489 = vmatpush2.xpose.msra.mxu0 0.0
        %1490 = vmatprep.subr.mxu0 0.0
        %1491 = vmatpush2.xpose.msra.mxu0 0.0
        %1492 = vmatprep.subr.mxu0 0.0
        %1493 = vmatpush2.xpose.msra.mxu0 0.0
        %1494 = vmatprep.subr.mxu0 0.0
        %1495 = vmatpush2.xpose.msra.mxu0 0.0
        %1496 = vmatprep.mubr.f32.mxu0 0.0
        %1497 = vmatmul.mubr.f32.gmra.mxu0 %v1428
        %v1498 = vpop.f32.mrf.mxu0
        %v1499 = vadd.f32 0.0, %v1498
        %v1500 = vpop.f32.mrf.mxu0
        %1501 = vdwg.mxu0
        %v1502 = vmul.f32 %v1499, 0.35355338
        %v1503 = vadd.f32 %v1502, %v1021
        %v1504 = vsel %vm941, %v1503, -inf
        %1505 = vmax.xlane.f32.xlu0 %v1504
        %v1506 = vpop.xlane.xlu0 %1505
        %v1507 = vsub.f32 %v1503, %v1506
        %v1508 = vmul.f32 %v1507, 1.442695
        %v1509 = vpow.pop %v1508
        %v1510 = vsel %vm941, %v1509, 0.0
        %1511 = vadd.xlane.f32.xlu0 %v1510
        %v1512 = vpop.xlane.xlu0 %1511
        %v1513 = vrcp.pop %v1512
        %v1514 = vmul.f32 %v1509, %v1513
        %1515 = vrot.lane.b32.xlu0 %v931, 48
        %v1516 = vpop.permute.xlu0 %1515
        %v1519 = vsel %vm941, %v1514, 0
        %1521 = vmatprep.subr.mxu0 0.0
        %1522 = vmatpush1.msra.mxu0 0.0
        %1523 = vmatprep.subr.mxu0 0.0
        %1524 = vmatpush1.msra.mxu0 0.0
        %1525 = vmatprep.subr.mxu0 0.0
        %1526 = vmatpush1.msra.mxu0 0.0
        %1527 = vmatprep.subr.mxu0 0.0
        %1528 = vmatpush1.msra.mxu0 0.0
        %1529 = vmatprep.subr.mxu0 0.0
        %1530 = vmatpush1.msra.mxu0 0.0
        %1531 = vmatprep.subr.mxu0 0.0
        %1532 = vmatpush1.msra.mxu0 0.0
        %1533 = vmatprep.subr.mxu0 0.0
        %1534 = vmatpush1.msra.mxu0 0.0
        %1535 = vmatprep.subr.mxu0 0.0
        %1536 = vmatpush1.msra.mxu0 0.0
        %1537 = vmatprep.subr.mxu0 0.0
        %1538 = vmatpush1.msra.mxu0 0.0
        %1539 = vmatprep.subr.mxu0 0.0
        %1540 = vmatpush1.msra.mxu0 0.0
        %1541 = vmatprep.subr.mxu0 0.0
        %1542 = vmatpush1.msra.mxu0 0.0
        %1543 = vmatprep.subr.mxu0 0.0
        %1544 = vmatpush1.msra.mxu0 0.0
        %1545 = vmatprep.subr.mxu0 0.0
        %1546 = vmatpush1.msra.mxu0 0.0
        %1547 = vmatprep.subr.mxu0 0.0
        %1548 = vmatpush1.msra.mxu0 0.0
        %1549 = vmatprep.subr.mxu0 0.0
        %1550 = vmatpush1.msra.mxu0 0.0
        %1551 = vmatprep.subr.mxu0 0.0
        %1552 = vmatpush1.msra.mxu0 %v1516
        %1553 = vmatprep.subr.mxu0 0.0
        %1554 = vmatpush2.msra.mxu0 0.0
        %1555 = vmatprep.subr.mxu0 0.0
        %1556 = vmatpush2.msra.mxu0 0.0
        %1557 = vmatprep.subr.mxu0 0.0
        %1558 = vmatpush2.msra.mxu0 0.0
        %1559 = vmatprep.subr.mxu0 0.0
        %1560 = vmatpush2.msra.mxu0 0.0
        %1561 = vmatprep.subr.mxu0 0.0
        %1562 = vmatpush2.msra.mxu0 0.0
        %1563 = vmatprep.subr.mxu0 0.0
        %1564 = vmatpush2.msra.mxu0 0.0
        %1565 = vmatprep.subr.mxu0 0.0
        %1566 = vmatpush2.msra.mxu0 0.0
        %1567 = vmatprep.subr.mxu0 0.0
        %1568 = vmatpush2.msra.mxu0 0.0
        %1569 = vmatprep.subr.mxu0 0.0
        %1570 = vmatpush2.msra.mxu0 0.0
        %1571 = vmatprep.subr.mxu0 0.0
        %1572 = vmatpush2.msra.mxu0 0.0
        %1573 = vmatprep.subr.mxu0 0.0
        %1574 = vmatpush2.msra.mxu0 0.0
        %1575 = vmatprep.subr.mxu0 0.0
        %1576 = vmatpush2.msra.mxu0 0.0
        %1577 = vmatprep.subr.mxu0 0.0
        %1578 = vmatpush2.msra.mxu0 0.0
        %1579 = vmatprep.subr.mxu0 0.0
        %1580 = vmatpush2.msra.mxu0 0.0
        %1581 = vmatprep.subr.mxu0 0.0
        %1582 = vmatpush2.msra.mxu0 0.0
        %1583 = vmatprep.subr.mxu0 0.0
        %1584 = vmatpush2.msra.mxu0 0.0
        %1585 = vmatprep.mubr.f32.mxu0 0.0
        %1586 = vmatmul.mubr.f32.gmra.mxu0 %v1519
        %v1587 = vpop.f32.mrf.mxu0
        %v1588 = vadd.f32 0.0, %v1587
        %v1589 = vpop.f32.mrf.mxu0
        %1590 = vdwg.mxu0
        %v1592 = vsel %vm941, %v1588, 0
        %1594 = vmatprep.subr.mxu0 0.0
        %1595 = vmatpush1.msra.mxu0 0.0
        %1596 = vmatprep.subr.mxu0 0.0
        %1597 = vmatpush1.msra.mxu0 0.0
        %1598 = vmatprep.subr.mxu0 0.0
        %1599 = vmatpush1.msra.mxu0 0.0
        %1600 = vmatprep.subr.mxu0 0.0
        %1601 = vmatpush1.msra.mxu0 0.0
        %1602 = vmatprep.subr.mxu0 0.0
        %1603 = vmatpush1.msra.mxu0 0.0
        %1604 = vmatprep.subr.mxu0 0.0
        %1605 = vmatpush1.msra.mxu0 0.0
        %1606 = vmatprep.subr.mxu0 0.0
        %1607 = vmatpush1.msra.mxu0 0.0
        %1608 = vmatprep.subr.mxu0 0.0
        %1609 = vmatpush1.msra.mxu0 0.0
        %1610 = vmatprep.subr.mxu0 0.0
        %1611 = vmatpush1.msra.mxu0 0.0
        %1612 = vmatprep.subr.mxu0 0.0
        %1613 = vmatpush1.msra.mxu0 0.0
        %1614 = vmatprep.subr.mxu0 0.0
        %1615 = vmatpush1.msra.mxu0 0.0
        %1616 = vmatprep.subr.mxu0 0.0
        %1617 = vmatpush1.msra.mxu0 0.0
        %1618 = vmatprep.subr.mxu0 0.0
        %1619 = vmatpush1.msra.mxu0 0.0
        %1620 = vmatprep.subr.mxu0 0.0
        %1621 = vmatpush1.msra.mxu0 0.0
        %1622 = vmatprep.subr.mxu0 0.0
        %1623 = vmatpush1.msra.mxu0 0.0
        %1624 = vmatprep.subr.mxu0 0.0
        %1625 = vmatpush1.msra.mxu0 %v936
        %1626 = vmatprep.subr.mxu0 0.0
        %1627 = vmatpush2.msra.mxu0 0.0
        %1628 = vmatprep.subr.mxu0 0.0
        %1629 = vmatpush2.msra.mxu0 0.0
        %1630 = vmatprep.subr.mxu0 0.0
        %1631 = vmatpush2.msra.mxu0 0.0
        %1632 = vmatprep.subr.mxu0 0.0
        %1633 = vmatpush2.msra.mxu0 0.0
        %1634 = vmatprep.subr.mxu0 0.0
        %1635 = vmatpush2.msra.mxu0 0.0
        %1636 = vmatprep.subr.mxu0 0.0
        %1637 = vmatpush2.msra.mxu0 0.0
        %1638 = vmatprep.subr.mxu0 0.0
        %1639 = vmatpush2.msra.mxu0 0.0
        %1640 = vmatprep.subr.mxu0 0.0
        %1641 = vmatpush2.msra.mxu0 0.0
        %1642 = vmatprep.subr.mxu0 0.0
        %1643 = vmatpush2.msra.mxu0 0.0
        %1644 = vmatprep.subr.mxu0 0.0
        %1645 = vmatpush2.msra.mxu0 0.0
        %1646 = vmatprep.subr.mxu0 0.0
        %1647 = vmatpush2.msra.mxu0 0.0
        %1648 = vmatprep.subr.mxu0 0.0
        %1649 = vmatpush2.msra.mxu0 0.0
        %1650 = vmatprep.subr.mxu0 0.0
        %1651 = vmatpush2.msra.mxu0 0.0
        %1652 = vmatprep.subr.mxu0 0.0
        %1653 = vmatpush2.msra.mxu0 0.0
        %1654 = vmatprep.subr.mxu0 0.0
        %1655 = vmatpush2.msra.mxu0 0.0
        %1656 = vmatprep.subr.mxu0 0.0
        %1657 = vmatpush2.msra.mxu0 0.0
        %1658 = vmatprep.mubr.f32.mxu0 0.0
        %1659 = vmatmul.mubr.f32.gmra.mxu0 %v1592
        %v1660 = vpop.f32.mrf.mxu0
        %v1661 = vadd.f32 0.0, %v1660
        %v1662 = vpop.f32.mrf.mxu0
        %1663 = vdwg.mxu0
        %v1664 = vadd.f32 %v1421, %v1661
        %1665 = vrot.lane.b32.xlu0 %v931, 104
        %v1666 = vpop.permute.xlu0 %1665
        %1667 = vrot.lane.b32.xlu0 %v931, 72
        %v1668 = vpop.permute.xlu0 %1667
        %v1669 = vsel %vm941, %v1666, 0
        %v1671 = vsel %vm941, %v1668, 0
        %1673 = vmatprep.subr.mxu0 0.0
        %1674 = vmatpush1.xpose.msra.mxu0 0.0
        %1675 = vmatprep.subr.mxu0 0.0
        %1676 = vmatpush1.xpose.msra.mxu0 0.0
        %1677 = vmatprep.subr.mxu0 0.0
        %1678 = vmatpush1.xpose.msra.mxu0 0.0
        %1679 = vmatprep.subr.mxu0 0.0
        %1680 = vmatpush1.xpose.msra.mxu0 0.0
        %1681 = vmatprep.subr.mxu0 0.0
        %1682 = vmatpush1.xpose.msra.mxu0 0.0
        %1683 = vmatprep.subr.mxu0 0.0
        %1684 = vmatpush1.xpose.msra.mxu0 0.0
        %1685 = vmatprep.subr.mxu0 0.0
        %1686 = vmatpush1.xpose.msra.mxu0 0.0
        %1687 = vmatprep.subr.mxu0 0.0
        %1688 = vmatpush1.xpose.msra.mxu0 0.0
        %1689 = vmatprep.subr.mxu0 0.0
        %1690 = vmatpush1.xpose.msra.mxu0 0.0
        %1691 = vmatprep.subr.mxu0 0.0
        %1692 = vmatpush1.xpose.msra.mxu0 0.0
        %1693 = vmatprep.subr.mxu0 0.0
        %1694 = vmatpush1.xpose.msra.mxu0 0.0
        %1695 = vmatprep.subr.mxu0 0.0
        %1696 = vmatpush1.xpose.msra.mxu0 0.0
        %1697 = vmatprep.subr.mxu0 0.0
        %1698 = vmatpush1.xpose.msra.mxu0 0.0
        %1699 = vmatprep.subr.mxu0 0.0
        %1700 = vmatpush1.xpose.msra.mxu0 0.0
        %1701 = vmatprep.subr.mxu0 0.0
        %1702 = vmatpush1.xpose.msra.mxu0 0.0
        %1703 = vmatprep.subr.mxu0 0.0
        %1704 = vmatpush1.xpose.msra.mxu0 %v1671
        %1705 = vmatprep.subr.mxu0 0.0
        %1706 = vmatpush2.xpose.msra.mxu0 0.0
        %1707 = vmatprep.subr.mxu0 0.0
        %1708 = vmatpush2.xpose.msra.mxu0 0.0
        %1709 = vmatprep.subr.mxu0 0.0
        %1710 = vmatpush2.xpose.msra.mxu0 0.0
        %1711 = vmatprep.subr.mxu0 0.0
        %1712 = vmatpush2.xpose.msra.mxu0 0.0
        %1713 = vmatprep.subr.mxu0 0.0
        %1714 = vmatpush2.xpose.msra.mxu0 0.0
        %1715 = vmatprep.subr.mxu0 0.0
        %1716 = vmatpush2.xpose.msra.mxu0 0.0
        %1717 = vmatprep.subr.mxu0 0.0
        %1718 = vmatpush2.xpose.msra.mxu0 0.0
        %1719 = vmatprep.subr.mxu0 0.0
        %1720 = vmatpush2.xpose.msra.mxu0 0.0
        %1721 = vmatprep.subr.mxu0 0.0
        %1722 = vmatpush2.xpose.msra.mxu0 0.0
        %1723 = vmatprep.subr.mxu0 0.0
        %1724 = vmatpush2.xpose.msra.mxu0 0.0
        %1725 = vmatprep.subr.mxu0 0.0
        %1726 = vmatpush2.xpose.msra.mxu0 0.0
        %1727 = vmatprep.subr.mxu0 0.0
        %1728 = vmatpush2.xpose.msra.mxu0 0.0
        %1729 = vmatprep.subr.mxu0 0.0
        %1730 = vmatpush2.xpose.msra.mxu0 0.0
        %1731 = vmatprep.subr.mxu0 0.0
        %1732 = vmatpush2.xpose.msra.mxu0 0.0
        %1733 = vmatprep.subr.mxu0 0.0
        %1734 = vmatpush2.xpose.msra.mxu0 0.0
        %1735 = vmatprep.subr.mxu0 0.0
        %1736 = vmatpush2.xpose.msra.mxu0 0.0
        %1737 = vmatprep.mubr.f32.mxu0 0.0
        %1738 = vmatmul.mubr.f32.gmra.mxu0 %v1669
        %v1739 = vpop.f32.mrf.mxu0
        %v1740 = vadd.f32 0.0, %v1739
        %v1741 = vpop.f32.mrf.mxu0
        %1742 = vdwg.mxu0
        %v1743 = vmul.f32 %v1740, 0.35355338
        %v1744 = vadd.f32 %v1743, %v1021
        %v1745 = vsel %vm941, %v1744, -inf
        %1746 = vmax.xlane.f32.xlu0 %v1745
        %v1747 = vpop.xlane.xlu0 %1746
        %v1748 = vsub.f32 %v1744, %v1747
        %v1749 = vmul.f32 %v1748, 1.442695
        %v1750 = vpow.pop %v1749
        %v1751 = vsel %vm941, %v1750, 0.0
        %1752 = vadd.xlane.f32.xlu0 %v1751
        %v1753 = vpop.xlane.xlu0 %1752
        %v1754 = vrcp.pop %v1753
        %v1755 = vmul.f32 %v1750, %v1754
        %1756 = vrot.lane.b32.xlu0 %v931, 40
        %v1757 = vpop.permute.xlu0 %1756
        %v1760 = vsel %vm941, %v1755, 0
        %1762 = vmatprep.subr.mxu0 0.0
        %1763 = vmatpush1.msra.mxu0 0.0
        %1764 = vmatprep.subr.mxu0 0.0
        %1765 = vmatpush1.msra.mxu0 0.0
        %1766 = vmatprep.subr.mxu0 0.0
        %1767 = vmatpush1.msra.mxu0 0.0
        %1768 = vmatprep.subr.mxu0 0.0
        %1769 = vmatpush1.msra.mxu0 0.0
        %1770 = vmatprep.subr.mxu0 0.0
        %1771 = vmatpush1.msra.mxu0 0.0
        %1772 = vmatprep.subr.mxu0 0.0
        %1773 = vmatpush1.msra.mxu0 0.0
        %1774 = vmatprep.subr.mxu0 0.0
        %1775 = vmatpush1.msra.mxu0 0.0
        %1776 = vmatprep.subr.mxu0 0.0
        %1777 = vmatpush1.msra.mxu0 0.0
        %1778 = vmatprep.subr.mxu0 0.0
        %1779 = vmatpush1.msra.mxu0 0.0
        %1780 = vmatprep.subr.mxu0 0.0
        %1781 = vmatpush1.msra.mxu0 0.0
        %1782 = vmatprep.subr.mxu0 0.0
        %1783 = vmatpush1.msra.mxu0 0.0
        %1784 = vmatprep.subr.mxu0 0.0
        %1785 = vmatpush1.msra.mxu0 0.0
        %1786 = vmatprep.subr.mxu0 0.0
        %1787 = vmatpush1.msra.mxu0 0.0
        %1788 = vmatprep.subr.mxu0 0.0
        %1789 = vmatpush1.msra.mxu0 0.0
        %1790 = vmatprep.subr.mxu0 0.0
        %1791 = vmatpush1.msra.mxu0 0.0
        %1792 = vmatprep.subr.mxu0 0.0
        %1793 = vmatpush1.msra.mxu0 %v1757
        %1794 = vmatprep.subr.mxu0 0.0
        %1795 = vmatpush2.msra.mxu0 0.0
        %1796 = vmatprep.subr.mxu0 0.0
        %1797 = vmatpush2.msra.mxu0 0.0
        %1798 = vmatprep.subr.mxu0 0.0
        %1799 = vmatpush2.msra.mxu0 0.0
        %1800 = vmatprep.subr.mxu0 0.0
        %1801 = vmatpush2.msra.mxu0 0.0
        %1802 = vmatprep.subr.mxu0 0.0
        %1803 = vmatpush2.msra.mxu0 0.0
        %1804 = vmatprep.subr.mxu0 0.0
        %1805 = vmatpush2.msra.mxu0 0.0
        %1806 = vmatprep.subr.mxu0 0.0
        %1807 = vmatpush2.msra.mxu0 0.0
        %1808 = vmatprep.subr.mxu0 0.0
        %1809 = vmatpush2.msra.mxu0 0.0
        %1810 = vmatprep.subr.mxu0 0.0
        %1811 = vmatpush2.msra.mxu0 0.0
        %1812 = vmatprep.subr.mxu0 0.0
        %1813 = vmatpush2.msra.mxu0 0.0
        %1814 = vmatprep.subr.mxu0 0.0
        %1815 = vmatpush2.msra.mxu0 0.0
        %1816 = vmatprep.subr.mxu0 0.0
        %1817 = vmatpush2.msra.mxu0 0.0
        %1818 = vmatprep.subr.mxu0 0.0
        %1819 = vmatpush2.msra.mxu0 0.0
        %1820 = vmatprep.subr.mxu0 0.0
        %1821 = vmatpush2.msra.mxu0 0.0
        %1822 = vmatprep.subr.mxu0 0.0
        %1823 = vmatpush2.msra.mxu0 0.0
        %1824 = vmatprep.subr.mxu0 0.0
        %1825 = vmatpush2.msra.mxu0 0.0
        %1826 = vmatprep.mubr.f32.mxu0 0.0
        %1827 = vmatmul.mubr.f32.gmra.mxu0 %v1760
        %v1828 = vpop.f32.mrf.mxu0
        %v1829 = vadd.f32 0.0, %v1828
        %v1830 = vpop.f32.mrf.mxu0
        %1831 = vdwg.mxu0
        %v1833 = vsel %vm941, %v1829, 0
        %1835 = vmatprep.subr.mxu0 0.0
        %1836 = vmatpush1.msra.mxu0 0.0
        %1837 = vmatprep.subr.mxu0 0.0
        %1838 = vmatpush1.msra.mxu0 0.0
        %1839 = vmatprep.subr.mxu0 0.0
        %1840 = vmatpush1.msra.mxu0 0.0
        %1841 = vmatprep.subr.mxu0 0.0
        %1842 = vmatpush1.msra.mxu0 0.0
        %1843 = vmatprep.subr.mxu0 0.0
        %1844 = vmatpush1.msra.mxu0 0.0
        %1845 = vmatprep.subr.mxu0 0.0
        %1846 = vmatpush1.msra.mxu0 0.0
        %1847 = vmatprep.subr.mxu0 0.0
        %1848 = vmatpush1.msra.mxu0 0.0
        %1849 = vmatprep.subr.mxu0 0.0
        %1850 = vmatpush1.msra.mxu0 0.0
        %1851 = vmatprep.subr.mxu0 0.0
        %1852 = vmatpush1.msra.mxu0 0.0
        %1853 = vmatprep.subr.mxu0 0.0
        %1854 = vmatpush1.msra.mxu0 0.0
        %1855 = vmatprep.subr.mxu0 0.0
        %1856 = vmatpush1.msra.mxu0 0.0
        %1857 = vmatprep.subr.mxu0 0.0
        %1858 = vmatpush1.msra.mxu0 0.0
        %1859 = vmatprep.subr.mxu0 0.0
        %1860 = vmatpush1.msra.mxu0 0.0
        %1861 = vmatprep.subr.mxu0 0.0
        %1862 = vmatpush1.msra.mxu0 0.0
        %1863 = vmatprep.subr.mxu0 0.0
        %1864 = vmatpush1.msra.mxu0 0.0
        %1865 = vmatprep.subr.mxu0 0.0
        %1866 = vmatpush1.msra.mxu0 %v937
        %1867 = vmatprep.subr.mxu0 0.0
        %1868 = vmatpush2.msra.mxu0 0.0
        %1869 = vmatprep.subr.mxu0 0.0
        %1870 = vmatpush2.msra.mxu0 0.0
        %1871 = vmatprep.subr.mxu0 0.0
        %1872 = vmatpush2.msra.mxu0 0.0
        %1873 = vmatprep.subr.mxu0 0.0
        %1874 = vmatpush2.msra.mxu0 0.0
        %1875 = vmatprep.subr.mxu0 0.0
        %1876 = vmatpush2.msra.mxu0 0.0
        %1877 = vmatprep.subr.mxu0 0.0
        %1878 = vmatpush2.msra.mxu0 0.0
        %1879 = vmatprep.subr.mxu0 0.0
        %1880 = vmatpush2.msra.mxu0 0.0
        %1881 = vmatprep.subr.mxu0 0.0
        %1882 = vmatpush2.msra.mxu0 0.0
        %1883 = vmatprep.subr.mxu0 0.0
        %1884 = vmatpush2.msra.mxu0 0.0
        %1885 = vmatprep.subr.mxu0 0.0
        %1886 = vmatpush2.msra.mxu0 0.0
        %1887 = vmatprep.subr.mxu0 0.0
        %1888 = vmatpush2.msra.mxu0 0.0
        %1889 = vmatprep.subr.mxu0 0.0
        %1890 = vmatpush2.msra.mxu0 0.0
        %1891 = vmatprep.subr.mxu0 0.0
        %1892 = vmatpush2.msra.mxu0 0.0
        %1893 = vmatprep.subr.mxu0 0.0
        %1894 = vmatpush2.msra.mxu0 0.0
        %1895 = vmatprep.subr.mxu0 0.0
        %1896 = vmatpush2.msra.mxu0 0.0
        %1897 = vmatprep.subr.mxu0 0.0
        %1898 = vmatpush2.msra.mxu0 0.0
        %1899 = vmatprep.mubr.f32.mxu0 0.0
        %1900 = vmatmul.mubr.f32.gmra.mxu0 %v1833
        %v1901 = vpop.f32.mrf.mxu0
        %v1902 = vadd.f32 0.0, %v1901
        %v1903 = vpop.f32.mrf.mxu0
        %1904 = vdwg.mxu0
        %v1905 = vadd.f32 %v1664, %v1902
        %v1906 = vld [vmem:[%s777] sm:$0x1]
        %v1908 = vlaneseq
        %v1909 = vshrl.u32 %v1908, 7
        %v1910 = vsub.s32 0, %v1909
        %v1911 = vrot.slane %v1906, %v1910
        %v1913 = vadd.f32 %v1905, %v1911
        %v1914 = vadd.f32 %v1913, %v847
        %v1915 = vld [vmem:[%s780] sm:$0x1]
        %v1916 = vld [vmem:[%s783] sm:$0x1]
        %v1917 = vsel %vm860, %v1914, 0.0
        %1918 = vadd.xlane.f32.xlu0 %v1917
        %v1919 = vpop.xlane.xlu0 %1918
        %v1920 = vrcp.pop 32.0
        %v1921 = vmul.f32 %v1919, %v1920
        %v1922 = vsub.f32 %v1914, %v1921
        %v1923 = vmul.f32 %v1922, %v1922
        %v1924 = vsel %vm860, %v1923, 0.0
        %1925 = vadd.xlane.f32.xlu0 %v1924
        %v1926 = vpop.xlane.xlu0 %1925
        %v1927 = vmul.f32 %v1926, %v1920
        %v1928 = vadd.f32 %v1927, 1e-12
        %v1929 = vrsqrt.pop %v1928
        %v1930 = vmul.f32 %v1922, %v1929
        %v1932 = vlaneseq
        %v1933 = vshrl.u32 %v1932, 7
        %v1934 = vsub.s32 0, %v1933
        %v1935 = vrot.slane %v1915, %v1934
        %v1937 = vmul.f32 %v1930, %v1935
        %v1939 = vlaneseq
        %v1940 = vshrl.u32 %v1939, 7
        %v1941 = vsub.s32 0, %v1940
        %v1942 = vrot.slane %v1916, %v1941
        %v1944 = vadd.f32 %v1937, %v1942
        %v1945 = vld [vmem:[%s788] sm:$0xff]
        %v1946 = vld [vmem:[%s788 + $0x8] sm:$0xff]
        %v1947 = vld [vmem:[%s788 + $0x10] sm:$0xff]
        %v1948 = vld [vmem:[%s788 + $0x18] sm:$0xff]
        %v1949 = vld [vmem:[%s791] sm:$0x1]
        %v1951 = vlaneseq
        %v1952 = vshrl.u32 %v1951, 7
        %v1953 = vsub.s32 0, %v1952
        %v1954 = vrot.slane %v1949, %v1953
        %v1957 = vsel %vm860, %v1944, 0
        %1959 = vmatprep.subr.mxu0 0.0
        %1960 = vmatpush1.msra.mxu0 0.0
        %1961 = vmatprep.subr.mxu0 0.0
        %1962 = vmatpush1.msra.mxu0 0.0
        %1963 = vmatprep.subr.mxu0 0.0
        %1964 = vmatpush1.msra.mxu0 0.0
        %1965 = vmatprep.subr.mxu0 0.0
        %1966 = vmatpush1.msra.mxu0 0.0
        %1967 = vmatprep.subr.mxu0 0.0
        %1968 = vmatpush1.msra.mxu0 0.0
        %1969 = vmatprep.subr.mxu0 0.0
        %1970 = vmatpush1.msra.mxu0 0.0
        %1971 = vmatprep.subr.mxu0 0.0
        %1972 = vmatpush1.msra.mxu0 0.0
        %1973 = vmatprep.subr.mxu0 0.0
        %1974 = vmatpush1.msra.mxu0 0.0
        %1975 = vmatprep.subr.mxu0 0.0
        %1976 = vmatpush1.msra.mxu0 0.0
        %1977 = vmatprep.subr.mxu0 0.0
        %1978 = vmatpush1.msra.mxu0 0.0
        %1979 = vmatprep.subr.mxu0 0.0
        %1980 = vmatpush1.msra.mxu0 0.0
        %1981 = vmatprep.subr.mxu0 0.0
        %1982 = vmatpush1.msra.mxu0 0.0
        %1983 = vmatprep.subr.mxu0 0.0
        %1984 = vmatpush1.msra.mxu0 %v1948
        %1985 = vmatprep.subr.mxu0 0.0
        %1986 = vmatpush1.msra.mxu0 %v1947
        %1987 = vmatprep.subr.mxu0 0.0
        %1988 = vmatpush1.msra.mxu0 %v1946
        %1989 = vmatprep.subr.mxu0 0.0
        %1990 = vmatpush1.msra.mxu0 %v1945
        %1991 = vmatprep.subr.mxu0 0.0
        %1992 = vmatpush2.msra.mxu0 0.0
        %1993 = vmatprep.subr.mxu0 0.0
        %1994 = vmatpush2.msra.mxu0 0.0
        %1995 = vmatprep.subr.mxu0 0.0
        %1996 = vmatpush2.msra.mxu0 0.0
        %1997 = vmatprep.subr.mxu0 0.0
        %1998 = vmatpush2.msra.mxu0 0.0
        %1999 = vmatprep.subr.mxu0 0.0
        %2000 = vmatpush2.msra.mxu0 0.0
        %2001 = vmatprep.subr.mxu0 0.0
        %2002 = vmatpush2.msra.mxu0 0.0
        %2003 = vmatprep.subr.mxu0 0.0
        %2004 = vmatpush2.msra.mxu0 0.0
        %2005 = vmatprep.subr.mxu0 0.0
        %2006 = vmatpush2.msra.mxu0 0.0
        %2007 = vmatprep.subr.mxu0 0.0
        %2008 = vmatpush2.msra.mxu0 0.0
        %2009 = vmatprep.subr.mxu0 0.0
        %2010 = vmatpush2.msra.mxu0 0.0
        %2011 = vmatprep.subr.mxu0 0.0
        %2012 = vmatpush2.msra.mxu0 0.0
        %2013 = vmatprep.subr.mxu0 0.0
        %2014 = vmatpush2.msra.mxu0 0.0
        %2015 = vmatprep.subr.mxu0 0.0
        %2016 = vmatpush2.msra.mxu0 0.0
        %2017 = vmatprep.subr.mxu0 0.0
        %2018 = vmatpush2.msra.mxu0 0.0
        %2019 = vmatprep.subr.mxu0 0.0
        %2020 = vmatpush2.msra.mxu0 0.0
        %2021 = vmatprep.subr.mxu0 0.0
        %2022 = vmatpush2.msra.mxu0 0.0
        %2023 = vmatprep.mubr.f32.mxu0 0.0
        %2024 = vmatmul.mubr.f32.gmra.mxu0 %v1957
        %v2025 = vpop.f32.mrf.mxu0
        %v2026 = vadd.f32 %v1954, %v2025
        %v2027 = vpop.f32.mrf.mxu0
        %2028 = vdwg.mxu0
        %v2029 = vmul.f32 %v2026, 0.5
        %v2030 = vmul.f32 %v2026, 0.044715
        %v2031 = vmul.f32 %v2030, %v2026
        %v2032 = vmul.f32 %v2031, %v2026
        %v2033 = vadd.f32 %v2026, %v2032
        %v2034 = vmul.f32 %v2033, 0.7978846
        %v2035 = vtanh.pop %v2034
        %v2036 = vadd.f32 %v2035, 1.0
        %v2037 = vmul.f32 %v2029, %v2036
        %v2038 = vld [vmem:[%s796] sm:$0xff]
        %v2039 = vld [vmem:[%s796 + $0x8] sm:$0xff]
        %v2040 = vld [vmem:[%s796 + $0x10] sm:$0xff]
        %v2041 = vld [vmem:[%s796 + $0x18] sm:$0xff]
        %v2042 = vld [vmem:[%s796 + $0x20] sm:$0xff]
        %v2043 = vld [vmem:[%s796 + $0x28] sm:$0xff]
        %v2044 = vld [vmem:[%s796 + $0x30] sm:$0xff]
        %v2045 = vld [vmem:[%s796 + $0x38] sm:$0xff]
        %v2046 = vld [vmem:[%s799] sm:$0x1]
        %v2048 = vlaneseq
        %v2049 = vshrl.u32 %v2048, 7
        %v2050 = vsub.s32 0, %v2049
        %v2051 = vrot.slane %v2046, %v2050
        %vm2053 = vcmask 523264
        %v2055 = vsel %vm2053, %v2037, 0
        %2057 = vmatprep.subr.mxu0 0.0
        %2058 = vmatpush1.msra.mxu0 0.0
        %2059 = vmatprep.subr.mxu0 0.0
        %2060 = vmatpush1.msra.mxu0 0.0
        %2061 = vmatprep.subr.mxu0 0.0
        %2062 = vmatpush1.msra.mxu0 0.0
        %2063 = vmatprep.subr.mxu0 0.0
        %2064 = vmatpush1.msra.mxu0 0.0
        %2065 = vmatprep.subr.mxu0 0.0
        %2066 = vmatpush1.msra.mxu0 0.0
        %2067 = vmatprep.subr.mxu0 0.0
        %2068 = vmatpush1.msra.mxu0 0.0
        %2069 = vmatprep.subr.mxu0 0.0
        %2070 = vmatpush1.msra.mxu0 0.0
        %2071 = vmatprep.subr.mxu0 0.0
        %2072 = vmatpush1.msra.mxu0 0.0
        %2073 = vmatprep.subr.mxu0 0.0
        %2074 = vmatpush1.msra.mxu0 %v2045
        %2075 = vmatprep.subr.mxu0 0.0
        %2076 = vmatpush1.msra.mxu0 %v2044
        %2077 = vmatprep.subr.mxu0 0.0
        %2078 = vmatpush1.msra.mxu0 %v2043
        %2079 = vmatprep.subr.mxu0 0.0
        %2080 = vmatpush1.msra.mxu0 %v2042
        %2081 = vmatprep.subr.mxu0 0.0
        %2082 = vmatpush1.msra.mxu0 %v2041
        %2083 = vmatprep.subr.mxu0 0.0
        %2084 = vmatpush1.msra.mxu0 %v2040
        %2085 = vmatprep.subr.mxu0 0.0
        %2086 = vmatpush1.msra.mxu0 %v2039
        %2087 = vmatprep.subr.mxu0 0.0
        %2088 = vmatpush1.msra.mxu0 %v2038
        %2089 = vmatprep.subr.mxu0 0.0
        %2090 = vmatpush2.msra.mxu0 0.0
        %2091 = vmatprep.subr.mxu0 0.0
        %2092 = vmatpush2.msra.mxu0 0.0
        %2093 = vmatprep.subr.mxu0 0.0
        %2094 = vmatpush2.msra.mxu0 0.0
        %2095 = vmatprep.subr.mxu0 0.0
        %2096 = vmatpush2.msra.mxu0 0.0
        %2097 = vmatprep.subr.mxu0 0.0
        %2098 = vmatpush2.msra.mxu0 0.0
        %2099 = vmatprep.subr.mxu0 0.0
        %2100 = vmatpush2.msra.mxu0 0.0
        %2101 = vmatprep.subr.mxu0 0.0
        %2102 = vmatpush2.msra.mxu0 0.0
        %2103 = vmatprep.subr.mxu0 0.0
        %2104 = vmatpush2.msra.mxu0 0.0
        %2105 = vmatprep.subr.mxu0 0.0
        %2106 = vmatpush2.msra.mxu0 0.0
        %2107 = vmatprep.subr.mxu0 0.0
        %2108 = vmatpush2.msra.mxu0 0.0
        %2109 = vmatprep.subr.mxu0 0.0
        %2110 = vmatpush2.msra.mxu0 0.0
        %2111 = vmatprep.subr.mxu0 0.0
        %2112 = vmatpush2.msra.mxu0 0.0
        %2113 = vmatprep.subr.mxu0 0.0
        %2114 = vmatpush2.msra.mxu0 0.0
        %2115 = vmatprep.subr.mxu0 0.0
        %2116 = vmatpush2.msra.mxu0 0.0
        %2117 = vmatprep.subr.mxu0 0.0
        %2118 = vmatpush2.msra.mxu0 0.0
        %2119 = vmatprep.subr.mxu0 0.0
        %2120 = vmatpush2.msra.mxu0 0.0
        %2121 = vmatprep.mubr.f32.mxu0 0.0
        %2122 = vmatmul.mubr.f32.gmra.mxu0 %v2055
        %v2123 = vpop.f32.mrf.mxu0
        %v2124 = vadd.f32 %v2051, %v2123
        %v2125 = vpop.f32.mrf.mxu0
        %2126 = vdwg.mxu0
        %v2127 = vadd.f32 %v2124, %v1944
        %v2128 = vld [vmem:[%s802] sm:$0x1]
        %v2129 = vld [vmem:[%s805] sm:$0x1]
        %v2130 = vsel %vm860, %v2127, 0.0
        %2131 = vadd.xlane.f32.xlu0 %v2130
        %v2132 = vpop.xlane.xlu0 %2131
        %v2133 = vmul.f32 %v2132, %v1920
        %v2134 = vsub.f32 %v2127, %v2133
        %v2135 = vmul.f32 %v2134, %v2134
        %v2136 = vsel %vm860, %v2135, 0.0
        %2137 = vadd.xlane.f32.xlu0 %v2136
        %v2138 = vpop.xlane.xlu0 %2137
        %v2139 = vmul.f32 %v2138, %v1920
        %v2140 = vadd.f32 %v2139, 1e-12
        %v2141 = vrsqrt.pop %v2140
        %v2142 = vmul.f32 %v2134, %v2141
        %v2144 = vlaneseq
        %v2145 = vshrl.u32 %v2144, 7
        %v2146 = vsub.s32 0, %v2145
        %v2147 = vrot.slane %v2128, %v2146
        %v2149 = vmul.f32 %v2142, %v2147
        %v2151 = vlaneseq
        %v2152 = vshrl.u32 %v2151, 7
        %v2153 = vsub.s32 0, %v2152
        %v2154 = vrot.slane %v2129, %v2153
        %v2156 = vadd.f32 %v2149, %v2154
        %2157 = vst.msk [vmem:[#allocation2] sm:$0xff] %vm860, %v2156
        %2158 = vst.msk [vmem:[%s750] sm:$0xff] %vm860, %v2156
        %s2159 = sand.u32 %s505, 1
        %s2160 = scalar_lea.sflag [#allocation4], %s2159
        %s2161 = sand.u32 %s505, 1
        %s2162 = smul.addr %s2161, 8
        %s2163 = scalar_lea.vmem [#allocation3], %s2162
        // Predicated region
        $region97: #{bert_forward.1} parent=91 // pred_check
          %p2164 = pneg %p515
        $region98: #{bert_forward.1} parent=91 // pred_check_branch
          %2166 = sbr.rel (%p2164) target = $region100
        $region99: #{bert_forward.1} parent=91 // pred_region
          %s2168 = ssub.s32 128, 128
          %2169 = vsyncadd %s2160, %s2168
          %s2170 = smul.addr %s36, 128
          %s2171 = scalar_lea.hbm %s18, %s2170
          %s2173 = sshll.u32 %s2163, 4
          %s2174 = int_to_ptr.vmem [resolvable:$true] %s2173
          %2176 = dma.vmem_to_hbm [thread:$0]  %s2174, 128, %s2171, %s2160
        $region100: #{bert_forward.1} parent=91 // pred_fallthru
          _
      $region92: #{bert_forward.1} parent=5 // pred_fallthru
        _
      %p2177 = scmp.le.s32.totalorder 2, %s27
      // Predicated region
      $region101: #{bert_forward.1} parent=5 // pred_check
        %p2178 = pneg %p2177
      $region102: #{bert_forward.1} parent=5 // pred_check_branch
        %2180 = sbr.rel (%p2178) target = $region104
      $region103: #{bert_forward.1} parent=5 // pred_region
        %s2181 = ssub.s32 %s27, 2
        // Predicated region
        $region105: #{bert_forward.1} parent=103 // pred_check
          %p2182 = pneg %p521
        $region106: #{bert_forward.1} parent=103 // pred_check_branch
          %2184 = sbr.rel (%p2182) target = $region108
        $region107: #{bert_forward.1} parent=103 // pred_region
          %s2185 = sand.u32 %s506, 1
          %s2186 = scalar_lea.sflag [#allocation4], %s2185
          %s2187 = sand.u32 %s506, 1
          %s2188 = smul.addr %s2187, 8
          %s2189 = scalar_lea.vmem [#allocation3], %s2188
          %2190 = dma.done %s2186, 128
        $region108: #{bert_forward.1} parent=103 // pred_fallthru
          _
      $region104: #{bert_forward.1} parent=5 // pred_fallthru
        _
    $region6: #{bert_forward.1} parent=1 // loop_footer
      %s31 = sadd.s32 1, %s27
    $region7: #{bert_forward.1} parent=1 // loop_footer_branch
      %26 = sbr.rel target = $region3
    $region8: #{bert_forward.1} parent=1 // loop_exit
      _
    %2191 = vsyncpa [#allocation4], 1
    %s2192 = scalar_lea.sflag [#allocation4], 1
    %2193 = vsyncpa %s2192, 1

</llo_original>
